<compile_context>
chip_gen: v7x
topology: tpu7x:2x2x1
jax: 0.10.0
libtpu: 0.0.40
codegen_flags: <defaults>
</compile_context>

<pallas_src>
import functools

import jax
import jax.numpy as jnp
from jax import lax
from jax.experimental import pallas as pl
from jax.experimental.pallas import tpu as pltpu


# y = a @ b.T expressed as a pure contraction of the last dims of both
# operands -> no transposed copy of the weight / K tile is materialized.
_CONTRACT_LAST = (((1,), (1,)), ((), ()))


def _attn_kernel(*refs, num_heads, head_dim, scale, q_tile, has_mask):
    # Ref layout (positional): in_refs..., out_ref, scratch_refs...
    #   mask path   : x, qin, wq, wk, wv, o, k_scr, v_scr
    #   no-mask path: x,      wq, wk, wv, o, k_scr, v_scr
    if has_mask:
        x_ref, qin_ref, wq_ref, wk_ref, wv_ref, o_ref, k_scr, v_scr = refs
    else:
        x_ref, wq_ref, wk_ref, wv_ref, o_ref, k_scr, v_scr = refs
        qin_ref = None

    H, D = num_heads, head_dim
    qi = pl.program_id(1)

    # --- K/V projections: once per batch element (query-tile 0), resident in
    # VMEM scratch across the remaining query tiles of this batch element. ---
    @pl.when(qi == 0)
    def _():
        x = x_ref[0]                                              # (N, C)
        k_scr[...] = lax.dot_general(
            x, wk_ref[...], _CONTRACT_LAST,
            preferred_element_type=jnp.float32).astype(k_scr.dtype)
        v_scr[...] = lax.dot_general(
            x, wv_ref[...], _CONTRACT_LAST,
            preferred_element_type=jnp.float32).astype(v_scr.dtype)

    # --- Query source tile. ---
    # mask path: the pipelined mask tile; no-mask path: slice the resident x
    # block so high_fea is never shipped (or passed) twice.
    if has_mask:
        q_src = qin_ref[0]                                        # (TQ, C)
    else:
        start = pl.multiple_of(qi * q_tile, q_tile)
        q_src = x_ref[0, pl.ds(start, q_tile), :]                 # (TQ, C)

    # --- Q projection for all heads at once (C-wide MXU tile, f32 acc). ---
    q_all = lax.dot_general(q_src, wq_ref[...], _CONTRACT_LAST,
                            preferred_element_type=jnp.float32)   # (TQ, C) f32
    # Softmax scale (dim**-0.5) applied to Q in f32 == scaling the scores.
    q_all = (q_all * scale).astype(k_scr.dtype)

    k_all = k_scr[...]                                            # (N, C)
    v_all = v_scr[...]

    # --- Per-head attention (static loop; H is small and known). ---
    # NOTE(perf): per-head width D should be a multiple of 128 (ideally 256)
    # in deployed configs to keep the v6e/v7x 256-wide MXU fed.
    for h in range(H):
        cs = slice(h * D, (h + 1) * D)
        q_h, k_h, v_h = q_all[:, cs], k_all[:, cs], v_all[:, cs]

        # scores = q_h @ k_h.T  (explicit contraction, f32 accumulation)
        s = lax.dot_general(q_h, k_h, _CONTRACT_LAST,
                            preferred_element_type=jnp.float32)   # (TQ, N) f32
        s = s - jnp.max(s, axis=-1, keepdims=True)
        p = jnp.exp(s)
        p = p * pl.reciprocal(jnp.sum(p, axis=-1, keepdims=True), approx=True)
        o_h = jnp.dot(p.astype(v_h.dtype), v_h,
                      preferred_element_type=jnp.float32)         # (TQ, D) f32

        # Heads are contiguous along channels -> this IS the module's final
        # (B, N, C) layout.  Store each head directly (no concat, bounded
        # live ranges); the pipelined output block stays lane-dense (C wide).
        o_ref[0, :, cs] = o_h.astype(o_ref.dtype)


def cross_layer_attention_pallas(high_fea, wq_high, wk_high, wv_high, wq_mask,
                                 num_heads, mask=None, *, q_tile=None,
                                 use_bf16_mxu=False):
    """Pallas implementation of cross_layer_attention.forward.

    high_fea : (B, N, C)
    mask     : (B, N, C) or None
    w*       : (C, C) nn.Linear weights (out_features, in_features)
    returns  : (B, N, C), dtype of high_fea
    """
    B, N, C = high_fea.shape
    H = num_heads
    assert C % H == 0, "channels must be divisible by num_heads"
    D = C // H
    scale = float(C) ** (-0.5)          # faithful to the module: dim**-0.5

    has_mask = mask is not None
    out_dtype = high_fea.dtype

    # bf16-MXU opt-in for f32 callers (v5e MXU is bf16/int-only; v6e/v7x bf16
    # peak is ~4x f32).  Default off to preserve reference-grade numerics.
    cpt_dtype = (jnp.bfloat16 if (use_bf16_mxu and out_dtype == jnp.float32)
                 else out_dtype)

    x = high_fea.astype(cpt_dtype)
    wq = (wq_mask if has_mask else wq_high).astype(cpt_dtype)
    wk = wk_high.astype(cpt_dtype)
    wv = wv_high.astype(cpt_dtype)

    operands = [x]
    if has_mask:
        operands.append(mask.astype(cpt_dtype))
    operands += [wq, wk, wv]

    # --- Query tiling: VMEM-budget driven. ---
    # Cap the f32 (TQ, N) score tile at ~4 MiB so the resident K/V scratch +
    # pipeline buffers fit comfortably on v7x (64 MiB VMEM).
    if q_tile is None:
        q_tile = N
        score_budget = 4 << 20                       # bytes per f32 score tile
        cap = max(8, score_budget // (4 * N))
        if N > cap:
            for cand in (1024, 512, 256, 128, 64, 32, 16, 8):
                if cand <= cap and N % cand == 0:
                    q_tile = cand
                    break
            # If N has no small divisor we fall back to q_tile = N (correct,
            # but may exceed the score-tile budget for ragged, very long N).
    q_tile = min(q_tile, N)
    assert N % q_tile == 0, "N must be divisible by q_tile"
    nq = N // q_tile

    # --- Explicit VMEM budget (default scoped limit is only 16/32 MiB). ---
    cpt_bytes = jnp.dtype(cpt_dtype).itemsize
    out_bytes = jnp.dtype(out_dtype).itemsize
    est = (2 * N * C * cpt_bytes                       # resident K/V scratch
           + 2 * N * C * cpt_bytes                     # double-buffered x block
           + (2 * q_tile * C * cpt_bytes if has_mask else 0)   # mask tile
           + 3 * 2 * C * C * cpt_bytes                 # double-buffered weights
           + 2 * q_tile * C * out_bytes                # double-buffered out
           + 4 * q_tile * C                            # f32 q_all
           + 3 * 4 * q_tile * N)                       # live f32 score/prob tiles
    vmem_limit = min(128 << 20, max(int(est * 1.5) + (4 << 20), 32 << 20))

    in_specs = [pl.BlockSpec((1, N, C), lambda b, qi: (b, 0, 0))]   # K/V (+Q) src
    if has_mask:
        in_specs.append(pl.BlockSpec((1, q_tile, C), lambda b, qi: (b, qi, 0)))
    # Grid-resident weights (constant index_map -> fetched once).
    # NOTE(perf): pipeline_mode=pl.Buffered(1) here would halve their VMEM
    # footprint (they gain nothing from double buffering); left default for
    # portability across jax versions.
    in_specs += [pl.BlockSpec((C, C), lambda b, qi: (0, 0))] * 3

    kernel = functools.partial(_attn_kernel, num_heads=H, head_dim=D,
                               scale=scale, q_tile=q_tile, has_mask=has_mask)

    return pl.pallas_call(
        kernel,
        out_shape=jax.ShapeDtypeStruct((B, N, C), out_dtype),
        grid_spec=pltpu.PrefetchScalarGridSpec(
            num_scalar_prefetch=0,
            grid=(B, nq),
            in_specs=in_specs,
            out_specs=pl.BlockSpec((1, q_tile, C), lambda b, qi: (b, qi, 0)),
            scratch_shapes=[
                pltpu.VMEM((N, C), cpt_dtype),   # K, all heads, batch b
                pltpu.VMEM((N, C), cpt_dtype),   # V, all heads, batch b
            ],
        ),
        compiler_params=pltpu.CompilerParams(
            dimension_semantics=("parallel", "arbitrary"),
            vmem_limit_bytes=vmem_limit),
    )(*operands)


def _reference(high_fea, wq_high, wk_high, wv_high, wq_mask, num_heads, mask=None):
    B, N, C = high_fea.shape
    H = num_heads
    D = C // H
    scale = float(C) ** (-0.5)

    def proj(x, w):
        y = x @ w.T                                                # (B, N, C)
        return jnp.transpose(y.reshape(B, N, H, D), (0, 2, 1, 3))  # (B, H, N, D)

    k = proj(high_fea, wk_high)
    v = proj(high_fea, wv_high)
    q = proj(high_fea, wq_high) if mask is None else proj(mask, wq_mask)

    attn = jax.nn.softmax(jnp.einsum("bhnd,bhmd->bhnm", q, k) * scale, axis=-1)
    out = jnp.einsum("bhnm,bhmd->bhnd", attn, v)
    return jnp.transpose(out, (0, 2, 1, 3)).reshape(B, N, C)


if __name__ == "__main__":
    B, N, C, H = 2, 8, 32, 4

    key = jax.random.PRNGKey(0)
    k_x, k_m, k_wq, k_wk, k_wv, k_wm = jax.random.split(key, 6)

    bound = 1.0 / (C ** 0.5)   # matches nn.Linear default init range
    high_fea = jax.random.normal(k_x, (B, N, C), dtype=jnp.float32)
    mask_inp = jax.random.normal(k_m, (B, N, C), dtype=jnp.float32)
    wq_high = jax.random.uniform(k_wq, (C, C), jnp.float32, -bound, bound)
    wk_high = jax.random.uniform(k_wk, (C, C), jnp.float32, -bound, bound)
    wv_high = jax.random.uniform(k_wv, (C, C), jnp.float32, -bound, bound)
    wq_mask = jax.random.uniform(k_wm, (C, C), jnp.float32, -bound, bound)

    # Path with mask (exercises mask_q) and path without mask (high_q).
    out_mask = cross_layer_attention_pallas(
        high_fea, wq_high, wk_high, wv_high, wq_mask, H, mask=mask_inp)
    out_nomask = cross_layer_attention_pallas(
        high_fea, wq_high, wk_high, wv_high, wq_mask, H, mask=None)
    jax.block_until_ready((out_mask, out_nomask))

    ref_mask = _reference(high_fea, wq_high, wk_high, wv_high, wq_mask, H,
                          mask=mask_inp)
    ref_nomask = _reference(high_fea, wq_high, wk_high, wv_high, wq_mask, H,
                            mask=None)

    # Tolerance covers pl.reciprocal(approx=True) (~2^-14 rel) in the softmax.
    assert jnp.allclose(out_mask, ref_mask, atol=2e-3, rtol=2e-3), \
        float(jnp.max(jnp.abs(out_mask - ref_mask)))
    assert jnp.allclose(out_nomask, ref_nomask, atol=2e-3, rtol=2e-3), \
        float(jnp.max(jnp.abs(out_nomask - ref_nomask)))

    # Optional bf16-MXU path for f32 callers (perf feedback); looser tolerance.
    out_bf16 = cross_layer_attention_pallas(
        high_fea, wq_high, wk_high, wv_high, wq_mask, H, mask=mask_inp,
        use_bf16_mxu=True)
    jax.block_until_ready(out_bf16)
    assert jnp.allclose(out_bf16, ref_mask, atol=5e-2, rtol=5e-2), \
        float(jnp.max(jnp.abs(out_bf16 - ref_mask)))

    print("KERNEL_OK")
</pallas_src>

<mosaic_0001>
module attributes {stable_mosaic.version = 11 : i64} {
  func.func @_attn_kernel(%arg0: i32, %arg1: i32, %arg2: memref<1x8x32xf32, #tpu.memory_space<vmem>>, %arg3: memref<1x8x32xf32, #tpu.memory_space<vmem>>, %arg4: memref<32x32xf32, #tpu.memory_space<vmem>>, %arg5: memref<32x32xf32, #tpu.memory_space<vmem>>, %arg6: memref<32x32xf32, #tpu.memory_space<vmem>>, %arg7: memref<1x8x32xf32, #tpu.memory_space<vmem>>, %arg8: memref<8x32xf32, #tpu.memory_space<vmem>>, %arg9: memref<8x32xf32, #tpu.memory_space<vmem>>) attributes {dimension_semantics = [#tpu.dimension_semantics<parallel>, #tpu.dimension_semantics<arbitrary>], iteration_bounds = array<i64: 2, 1>, scalar_prefetch = 0 : i64, scratch_operands = 2 : i64, tpu.core_type = #tpu.core_type<tc>, window_params = [{transform_indices = @transform_0, window_bounds = array<i64: 1, 8, 32>}, {transform_indices = @transform_1, window_bounds = array<i64: 1, 8, 32>}, {pipeline_mode = #tpu.pipeline_mode<synchronous>, transform_indices = @transform_2, window_bounds = array<i64: 32, 32>}, {pipeline_mode = #tpu.pipeline_mode<synchronous>, transform_indices = @transform_3, window_bounds = array<i64: 32, 32>}, {pipeline_mode = #tpu.pipeline_mode<synchronous>, transform_indices = @transform_4, window_bounds = array<i64: 32, 32>}, {transform_indices = @transform_5, window_bounds = array<i64: 1, 8, 32>}]} {
    %c0_i32 = arith.constant 0 : i32
    %0 = arith.cmpi eq, %arg1, %c0_i32 : i32
    %1 = arith.extui %0 : i1 to i32
    %c0_i32_0 = arith.constant 0 : i32
    %2 = arith.cmpi ne, %1, %c0_i32_0 : i32
    scf.if %2 {
      %c0_35 = arith.constant 0 : index
      %c0_36 = arith.constant 0 : index
      %c0_37 = arith.constant 0 : index
      %83 = vector.load %arg2[%c0_35, %c0_36, %c0_37] : memref<1x8x32xf32, #tpu.memory_space<vmem>>, vector<1x8x32xf32>
      %84 = vector.shape_cast %83 : vector<1x8x32xf32> to vector<8x32xf32>
      %c0_38 = arith.constant 0 : index
      %c0_39 = arith.constant 0 : index
      %85 = vector.load %arg5[%c0_38, %c0_39] : memref<32x32xf32, #tpu.memory_space<vmem>>, vector<32x32xf32>
      %cst_40 = arith.constant dense<0.000000e+00> : vector<8x32xf32>
      %86 = tpu.matmul %84, %85, %cst_40 {dimension_numbers = #tpu.dot_dimension_numbers<[1], [1], [0], [0], [0, 0, 1, 0], [], []>} : vector<8x32xf32>, vector<32x32xf32>, vector<8x32xf32> -> vector<8x32xf32>
      %c0_41 = arith.constant 0 : index
      %c0_42 = arith.constant 0 : index
      %87 = vector.load %arg8[%c0_41, %c0_42] : memref<8x32xf32, #tpu.memory_space<vmem>>, vector<8x32xf32>
      tpu.vector_store %arg8[%c0_41, %c0_42], %86 {strides = array<i32>} : memref<8x32xf32, #tpu.memory_space<vmem>>, vector<8x32xf32>,
      %c0_43 = arith.constant 0 : index
      %c0_44 = arith.constant 0 : index
      %88 = vector.load %arg6[%c0_43, %c0_44] : memref<32x32xf32, #tpu.memory_space<vmem>>, vector<32x32xf32>
      %cst_45 = arith.constant dense<0.000000e+00> : vector<8x32xf32>
      %89 = tpu.matmul %84, %88, %cst_45 {dimension_numbers = #tpu.dot_dimension_numbers<[1], [1], [0], [0], [0, 0, 1, 0], [], []>} : vector<8x32xf32>, vector<32x32xf32>, vector<8x32xf32> -> vector<8x32xf32>
      %c0_46 = arith.constant 0 : index
      %c0_47 = arith.constant 0 : index
      %90 = vector.load %arg9[%c0_46, %c0_47] : memref<8x32xf32, #tpu.memory_space<vmem>>, vector<8x32xf32>
      tpu.vector_store %arg9[%c0_46, %c0_47], %89 {strides = array<i32>} : memref<8x32xf32, #tpu.memory_space<vmem>>, vector<8x32xf32>,
    } else {
    }
    %c0 = arith.constant 0 : index
    %c0_1 = arith.constant 0 : index
    %c0_2 = arith.constant 0 : index
    %3 = vector.load %arg3[%c0, %c0_1, %c0_2] : memref<1x8x32xf32, #tpu.memory_space<vmem>>, vector<1x8x32xf32>
    %4 = vector.shape_cast %3 : vector<1x8x32xf32> to vector<8x32xf32>
    %c0_3 = arith.constant 0 : index
    %c0_4 = arith.constant 0 : index
    %5 = vector.load %arg4[%c0_3, %c0_4] : memref<32x32xf32, #tpu.memory_space<vmem>>, vector<32x32xf32>
    %cst = arith.constant dense<0.000000e+00> : vector<8x32xf32>
    %6 = tpu.matmul %4, %5, %cst {dimension_numbers = #tpu.dot_dimension_numbers<[1], [1], [0], [0], [0, 0, 1, 0], [], []>} : vector<8x32xf32>, vector<32x32xf32>, vector<8x32xf32> -> vector<8x32xf32>
    %cst_5 = arith.constant 0.176776692 : f32
    %7 = vector.broadcast %cst_5 : f32 to vector<8x32xf32>
    %8 = arith.mulf %6, %7 : vector<8x32xf32>
    %c0_6 = arith.constant 0 : index
    %c0_7 = arith.constant 0 : index
    %9 = vector.load %arg8[%c0_6, %c0_7] : memref<8x32xf32, #tpu.memory_space<vmem>>, vector<8x32xf32>
    %c0_8 = arith.constant 0 : index
    %c0_9 = arith.constant 0 : index
    %10 = vector.load %arg9[%c0_8, %c0_9] : memref<8x32xf32, #tpu.memory_space<vmem>>, vector<8x32xf32>
    %11 = vector.extract_strided_slice %8 {offsets = [0, 0], sizes = [8, 8], strides = [1, 1]} : vector<8x32xf32> to vector<8x8xf32>
    %12 = vector.extract_strided_slice %9 {offsets = [0, 0], sizes = [8, 8], strides = [1, 1]} : vector<8x32xf32> to vector<8x8xf32>
    %13 = vector.extract_strided_slice %10 {offsets = [0, 0], sizes = [8, 8], strides = [1, 1]} : vector<8x32xf32> to vector<8x8xf32>
    %cst_10 = arith.constant dense<0.000000e+00> : vector<8x8xf32>
    %14 = tpu.matmul %11, %12, %cst_10 {dimension_numbers = #tpu.dot_dimension_numbers<[1], [1], [0], [0], [0, 0, 1, 0], [], []>} : vector<8x8xf32>, vector<8x8xf32>, vector<8x8xf32> -> vector<8x8xf32>
    %cst_11 = arith.constant dense<0xFF800000> : vector<8xf32>
    %15 = vector.multi_reduction <maximumf>, %14, %cst_11 [1] : vector<8x8xf32> to vector<8xf32>
    %16 = vector.shape_cast %15 : vector<8xf32> to vector<8x1xf32>
    %17 = vector.broadcast %16 : vector<8x1xf32> to vector<8x8xf32>
    %18 = arith.subf %14, %17 : vector<8x8xf32>
    %19 = math.exp %18 : vector<8x8xf32>
    %cst_12 = arith.constant dense<0.000000e+00> : vector<8xf32>
    %20 = vector.multi_reduction <add>, %19, %cst_12 [1] : vector<8x8xf32> to vector<8xf32>
    %21 = vector.shape_cast %20 : vector<8xf32> to vector<8x1xf32>
    %22 = tpu.reciprocal %21 {approx = true} : vector<8x1xf32> -> vector<8x1xf32>
    %23 = vector.broadcast %22 : vector<8x1xf32> to vector<8x8xf32>
    %24 = arith.mulf %19, %23 : vector<8x8xf32>
    %cst_13 = arith.constant dense<0.000000e+00> : vector<8x8xf32>
    %25 = tpu.matmul %24, %13, %cst_13 {dimension_numbers = #tpu.dot_dimension_numbers<[1], [0], [0], [1], [0, 0, 1, 1], [], []>} : vector<8x8xf32>, vector<8x8xf32>, vector<8x8xf32> -> vector<8x8xf32>
    %c0_14 = arith.constant 0 : index
    %c0_15 = arith.constant 0 : index
    %c0_16 = arith.constant 0 : index
    %26 = vector.load %arg7[%c0_14, %c0_15, %c0_16] : memref<1x8x32xf32, #tpu.memory_space<vmem>>, vector<1x8x8xf32>
    %27 = vector.shape_cast %26 : vector<1x8x8xf32> to vector<8x8xf32>
    %28 = vector.shape_cast %25 : vector<8x8xf32> to vector<1x8x8xf32>
    tpu.vector_store %arg7[%c0_14, %c0_15, %c0_16], %28 {strides = array<i32>} : memref<1x8x32xf32, #tpu.memory_space<vmem>>, vector<1x8x8xf32>,
    %29 = vector.extract_strided_slice %8 {offsets = [0, 8], sizes = [8, 8], strides = [1, 1]} : vector<8x32xf32> to vector<8x8xf32>
    %30 = vector.extract_strided_slice %9 {offsets = [0, 8], sizes = [8, 8], strides = [1, 1]} : vector<8x32xf32> to vector<8x8xf32>
    %31 = vector.extract_strided_slice %10 {offsets = [0, 8], sizes = [8, 8], strides = [1, 1]} : vector<8x32xf32> to vector<8x8xf32>
    %cst_17 = arith.constant dense<0.000000e+00> : vector<8x8xf32>
    %32 = tpu.matmul %29, %30, %cst_17 {dimension_numbers = #tpu.dot_dimension_numbers<[1], [1], [0], [0], [0, 0, 1, 0], [], []>} : vector<8x8xf32>, vector<8x8xf32>, vector<8x8xf32> -> vector<8x8xf32>
    %cst_18 = arith.constant dense<0xFF800000> : vector<8xf32>
    %33 = vector.multi_reduction <maximumf>, %32, %cst_18 [1] : vector<8x8xf32> to vector<8xf32>
    %34 = vector.shape_cast %33 : vector<8xf32> to vector<8x1xf32>
    %35 = vector.broadcast %34 : vector<8x1xf32> to vector<8x8xf32>
    %36 = arith.subf %32, %35 : vector<8x8xf32>
    %37 = math.exp %36 : vector<8x8xf32>
    %cst_19 = arith.constant dense<0.000000e+00> : vector<8xf32>
    %38 = vector.multi_reduction <add>, %37, %cst_19 [1] : vector<8x8xf32> to vector<8xf32>
    %39 = vector.shape_cast %38 : vector<8xf32> to vector<8x1xf32>
    %40 = tpu.reciprocal %39 {approx = true} : vector<8x1xf32> -> vector<8x1xf32>
    %41 = vector.broadcast %40 : vector<8x1xf32> to vector<8x8xf32>
    %42 = arith.mulf %37, %41 : vector<8x8xf32>
    %cst_20 = arith.constant dense<0.000000e+00> : vector<8x8xf32>
    %43 = tpu.matmul %42, %31, %cst_20 {dimension_numbers = #tpu.dot_dimension_numbers<[1], [0], [0], [1], [0, 0, 1, 1], [], []>} : vector<8x8xf32>, vector<8x8xf32>, vector<8x8xf32> -> vector<8x8xf32>
    %c0_21 = arith.constant 0 : index
    %c0_22 = arith.constant 0 : index
    %c8 = arith.constant 8 : index
    %44 = vector.load %arg7[%c0_21, %c0_22, %c8] : memref<1x8x32xf32, #tpu.memory_space<vmem>>, vector<1x8x8xf32>
    %45 = vector.shape_cast %44 : vector<1x8x8xf32> to vector<8x8xf32>
    %46 = vector.shape_cast %43 : vector<8x8xf32> to vector<1x8x8xf32>
    tpu.vector_store %arg7[%c0_21, %c0_22, %c8], %46 {strides = array<i32>} : memref<1x8x32xf32, #tpu.memory_space<vmem>>, vector<1x8x8xf32>,
    %47 = vector.extract_strided_slice %8 {offsets = [0, 16], sizes = [8, 8], strides = [1, 1]} : vector<8x32xf32> to vector<8x8xf32>
    %48 = vector.extract_strided_slice %9 {offsets = [0, 16], sizes = [8, 8], strides = [1, 1]} : vector<8x32xf32> to vector<8x8xf32>
    %49 = vector.extract_strided_slice %10 {offsets = [0, 16], sizes = [8, 8], strides = [1, 1]} : vector<8x32xf32> to vector<8x8xf32>
    %cst_23 = arith.constant dense<0.000000e+00> : vector<8x8xf32>
    %50 = tpu.matmul %47, %48, %cst_23 {dimension_numbers = #tpu.dot_dimension_numbers<[1], [1], [0], [0], [0, 0, 1, 0], [], []>} : vector<8x8xf32>, vector<8x8xf32>, vector<8x8xf32> -> vector<8x8xf32>
    %cst_24 = arith.constant dense<0xFF800000> : vector<8xf32>
    %51 = vector.multi_reduction <maximumf>, %50, %cst_24 [1] : vector<8x8xf32> to vector<8xf32>
    %52 = vector.shape_cast %51 : vector<8xf32> to vector<8x1xf32>
    %53 = vector.broadcast %52 : vector<8x1xf32> to vector<8x8xf32>
    %54 = arith.subf %50, %53 : vector<8x8xf32>
    %55 = math.exp %54 : vector<8x8xf32>
    %cst_25 = arith.constant dense<0.000000e+00> : vector<8xf32>
    %56 = vector.multi_reduction <add>, %55, %cst_25 [1] : vector<8x8xf32> to vector<8xf32>
    %57 = vector.shape_cast %56 : vector<8xf32> to vector<8x1xf32>
    %58 = tpu.reciprocal %57 {approx = true} : vector<8x1xf32> -> vector<8x1xf32>
    %59 = vector.broadcast %58 : vector<8x1xf32> to vector<8x8xf32>
    %60 = arith.mulf %55, %59 : vector<8x8xf32>
    %cst_26 = arith.constant dense<0.000000e+00> : vector<8x8xf32>
    %61 = tpu.matmul %60, %49, %cst_26 {dimension_numbers = #tpu.dot_dimension_numbers<[1], [0], [0], [1], [0, 0, 1, 1], [], []>} : vector<8x8xf32>, vector<8x8xf32>, vector<8x8xf32> -> vector<8x8xf32>
    %c0_27 = arith.constant 0 : index
    %c0_28 = arith.constant 0 : index
    %c16 = arith.constant 16 : index
    %62 = vector.load %arg7[%c0_27, %c0_28, %c16] : memref<1x8x32xf32, #tpu.memory_space<vmem>>, vector<1x8x8xf32>
    %63 = vector.shape_cast %62 : vector<1x8x8xf32> to vector<8x8xf32>
    %64 = vector.shape_cast %61 : vector<8x8xf32> to vector<1x8x8xf32>
    tpu.vector_store %arg7[%c0_27, %c0_28, %c16], %64 {strides = array<i32>} : memref<1x8x32xf32, #tpu.memory_space<vmem>>, vector<1x8x8xf32>,
    %65 = vector.extract_strided_slice %8 {offsets = [0, 24], sizes = [8, 8], strides = [1, 1]} : vector<8x32xf32> to vector<8x8xf32>
    %66 = vector.extract_strided_slice %9 {offsets = [0, 24], sizes = [8, 8], strides = [1, 1]} : vector<8x32xf32> to vector<8x8xf32>
    %67 = vector.extract_strided_slice %10 {offsets = [0, 24], sizes = [8, 8], strides = [1, 1]} : vector<8x32xf32> to vector<8x8xf32>
    %cst_29 = arith.constant dense<0.000000e+00> : vector<8x8xf32>
    %68 = tpu.matmul %65, %66, %cst_29 {dimension_numbers = #tpu.dot_dimension_numbers<[1], [1], [0], [0], [0, 0, 1, 0], [], []>} : vector<8x8xf32>, vector<8x8xf32>, vector<8x8xf32> -> vector<8x8xf32>
    %cst_30 = arith.constant dense<0xFF800000> : vector<8xf32>
    %69 = vector.multi_reduction <maximumf>, %68, %cst_30 [1] : vector<8x8xf32> to vector<8xf32>
    %70 = vector.shape_cast %69 : vector<8xf32> to vector<8x1xf32>
    %71 = vector.broadcast %70 : vector<8x1xf32> to vector<8x8xf32>
    %72 = arith.subf %68, %71 : vector<8x8xf32>
    %73 = math.exp %72 : vector<8x8xf32>
    %cst_31 = arith.constant dense<0.000000e+00> : vector<8xf32>
    %74 = vector.multi_reduction <add>, %73, %cst_31 [1] : vector<8x8xf32> to vector<8xf32>
    %75 = vector.shape_cast %74 : vector<8xf32> to vector<8x1xf32>
    %76 = tpu.reciprocal %75 {approx = true} : vector<8x1xf32> -> vector<8x1xf32>
    %77 = vector.broadcast %76 : vector<8x1xf32> to vector<8x8xf32>
    %78 = arith.mulf %73, %77 : vector<8x8xf32>
    %cst_32 = arith.constant dense<0.000000e+00> : vector<8x8xf32>
    %79 = tpu.matmul %78, %67, %cst_32 {dimension_numbers = #tpu.dot_dimension_numbers<[1], [0], [0], [1], [0, 0, 1, 1], [], []>} : vector<8x8xf32>, vector<8x8xf32>, vector<8x8xf32> -> vector<8x8xf32>
    %c0_33 = arith.constant 0 : index
    %c0_34 = arith.constant 0 : index
    %c24 = arith.constant 24 : index
    %80 = vector.load %arg7[%c0_33, %c0_34, %c24] : memref<1x8x32xf32, #tpu.memory_space<vmem>>, vector<1x8x8xf32>
    %81 = vector.shape_cast %80 : vector<1x8x8xf32> to vector<8x8xf32>
    %82 = vector.shape_cast %79 : vector<8x8xf32> to vector<1x8x8xf32>
    tpu.vector_store %arg7[%c0_33, %c0_34, %c24], %82 {strides = array<i32>} : memref<1x8x32xf32, #tpu.memory_space<vmem>>, vector<1x8x8xf32>,
    return
  }
  func.func @transform_0(%arg0: i32, %arg1: i32) -> (i32, i32, i32) {
    %c0_i32 = arith.constant 0 : i32
    %c0_i32_0 = arith.constant 0 : i32
    %c0_i32_1 = arith.constant 0 : i32
    return %arg0, %c0_i32, %c0_i32_0 : i32, i32, i32
  }
  func.func @transform_1(%arg0: i32, %arg1: i32) -> (i32, i32, i32) {
    %c0_i32 = arith.constant 0 : i32
    %c0_i32_0 = arith.constant 0 : i32
    return %arg0, %arg1, %c0_i32 : i32, i32, i32
  }
  func.func @transform_2(%arg0: i32, %arg1: i32) -> (i32, i32) {
    %c0_i32 = arith.constant 0 : i32
    %c0_i32_0 = arith.constant 0 : i32
    %c0_i32_1 = arith.constant 0 : i32
    return %c0_i32, %c0_i32_0 : i32, i32
  }
  func.func @transform_3(%arg0: i32, %arg1: i32) -> (i32, i32) {
    %c0_i32 = arith.constant 0 : i32
    %c0_i32_0 = arith.constant 0 : i32
    %c0_i32_1 = arith.constant 0 : i32
    return %c0_i32, %c0_i32_0 : i32, i32
  }
  func.func @transform_4(%arg0: i32, %arg1: i32) -> (i32, i32) {
    %c0_i32 = arith.constant 0 : i32
    %c0_i32_0 = arith.constant 0 : i32
    %c0_i32_1 = arith.constant 0 : i32
    return %c0_i32, %c0_i32_0 : i32, i32
  }
  func.func @transform_5(%arg0: i32, %arg1: i32) -> (i32, i32, i32) {
    %c0_i32 = arith.constant 0 : i32
    %c0_i32_0 = arith.constant 0 : i32
    return %arg0, %arg1, %c0_i32 : i32, i32, i32
  }
}

</mosaic_0001>

<llo_original>
// kernel: tpu_custom_call.1
$region0: #{tpu_custom_call.1}
  #allocation0 [shape = 'u32[]', space=smem, size = 0x4, offset = 0x4, fixed_abs, tag = 'smem constant byte address 0x4 - core index']
  #allocation1 [shape = 'u32[144,128]{1,0:T(1,128)}', space=vmem, size = 0x12000, scoped, tag = 'internal scratch']
  #allocation2 [shape = 'f32[8,32]{1,0:T(8,128)}', space=vmem, size = 0x1000, scoped, tag = 'scratch operand']
  #allocation3 [shape = 'f32[8,32]{1,0:T(8,128)}', space=vmem, size = 0x1000, scoped, tag = 'scratch operand']
  %s0 = inlined_call_operand.hbm [shape: f32[2,8,32], index: 0, kind: input, shape index: {}]
  %s1 = inlined_call_operand.hbm [shape: f32[2,8,32], index: 1, kind: input, shape index: {}]
  %s2 = inlined_call_operand.hbm [shape: f32[32,32], index: 2, kind: input, shape index: {}]
  %s3 = inlined_call_operand.hbm [shape: f32[32,32], index: 3, kind: input, shape index: {}]
  %s4 = inlined_call_operand.hbm [shape: f32[32,32], index: 4, kind: input, shape index: {}]
  %s5 = inlined_call_operand.hbm [shape: f32[2,8,32], index: 5, kind: output, shape index: {}]
  %s6 = sld [smem:[#allocation0]]
  $region77: #{tpu_custom_call.1} parent=0
    _
  %s8 = ssub.s32 1, %s6
  %s9 = scalar_select 0, %s8, %s6
  $region1: #{tpu_custom_call.1} parent=0
    #allocation4 [shape = 'u8[8192]{0}', space=vmem, size = 0x2000, scoped, tag = 'input window, operand 0']
    #allocation5 [shape = 's32[2]{0}', space=sflag, size = 0x8, scoped, tag = 'scoped memory for tpu_custom_call.1']
    #allocation6 [shape = 's32[2]{0}', space=sflag, size = 0x8, scoped, tag = 'scoped memory for tpu_custom_call.1']
    #allocation7 [shape = 'u8[8192]{0}', space=vmem, size = 0x2000, scoped, tag = 'input window, operand 1']
    #allocation8 [shape = 's32[2]{0}', space=sflag, size = 0x8, scoped, tag = 'scoped memory for tpu_custom_call.1']
    #allocation9 [shape = 'u8[16384]{0}', space=vmem, size = 0x4000, scoped, tag = 'input window, operand 2, single buffered']
    #allocation10 [shape = 'u8[16384]{0}', space=vmem, size = 0x4000, scoped, tag = 'input window, operand 3, single buffered']
    #allocation11 [shape = 's32[1]{0}', space=sflag, size = 0x4, scoped, tag = 'scoped memory for tpu_custom_call.1']
    #allocation12 [shape = 'u8[16384]{0}', space=vmem, size = 0x4000, scoped, tag = 'input window, operand 4, single buffered']
    #allocation13 [shape = 'u8[8192]{0}', space=vmem, size = 0x2000, scoped, tag = 'output window, operand 0']
    %10 = vsyncpa [#allocation5], 0
    %s11 = scalar_lea.sflag [#allocation5], 1
    %12 = vsyncpa %s11, 0
    %13 = vsyncpa [#allocation8], 0
    %s14 = scalar_lea.sflag [#allocation8], 1
    %15 = vsyncpa %s14, 0
    %16 = vsyncpa [#allocation11], 0
    %17 = vsyncpa [#allocation6], 0
    %s18 = scalar_lea.sflag [#allocation6], 1
    %19 = vsyncpa %s18, 0
    loop: start=0, step=1, limit=4
    $region2: #{tpu_custom_call.1} parent=1 // loop_pre_header
      _
    $region3: #{tpu_custom_call.1} parent=1 // loop_header
      %s21 = sphi 0, %s25
      %p22 = scmp.ge.s32.totalorder %s21, 4
      %s28 = sphi 0, %s40
      %s29 = sphi 0, %s36
      %s30 = sphi 0, %s28
      %s31 = sphi 0, %s29
      %s32 = sphi 0, %s30
      %s33 = sphi 0, %s31
      %s43 = sphi 0, %s45
      %s46 = sphi 0, %s43
      %s47 = sphi 0, %s46
      %s63 = sphi 0, %s47
      %s71 = sphi 0, %s73
      %s74 = sphi 0, %s71
      %s75 = sphi 0, %s74
      %s91 = sphi 0, %s75
      %s95 = sphi 0, %s95
      %s97 = sphi 0, %s95
      %s98 = sphi 0, %s97
      %s112 = sphi 0, %s98
      %s116 = sphi 0, %s116
      %s118 = sphi 0, %s116
      %s119 = sphi 0, %s118
      %s133 = sphi 0, %s119
      %s137 = sphi 0, %s137
      %s139 = sphi 0, %s137
      %s140 = sphi 0, %s139
      %s154 = sphi 0, %s140
      %s162 = sphi 0, %s164
      %s165 = sphi 0, %s162
      %s166 = sphi 0, %s165
      %s182 = sphi 0, %s166
    $region4: #{tpu_custom_call.1} parent=1 // loop_header_branch
      %24 = sbr.rel (%p22) target = $region8
    $region5: #{tpu_custom_call.1} parent=1 // loop_body
      %s26 = ssub.s32 %s21, 1
      %s27 = ssub.s32 %s21, 2
      %s34 = sadd.s32 1, %s29
      %p35 = scmp.ge.s32.totalorder %s34, 1
      %s36 = scalar_select %p35, 0, %s34
      %s37 = sadd.s32 1, %s28
      %s38 = scalar_select %p35, %s37, %s28
      %p39 = scmp.ge.s32.totalorder %s38, 2
      %s40 = scalar_select %p39, 0, %s38
      %s41 = ssub.s32 %s28, %s40
      %p42 = scmp.eq.s32.totalorder %s41, 0
      %s44 = sadd.s32 %s43, 1
      %s45 = scalar_select %p42, %s43, %s44
      %p48 = pneg %p42
      %p49 = scmp.eq.s32.totalorder %s21, 1
      %p50 = por %p48, %p49
      %p51 = scmp.ne.s32.totalorder %s43, %s46
      %p52 = scmp.eq.s32.totalorder %s21, 0
      %p53 = por %p51, %p52
      %p54 = scmp.ne.s32.totalorder %s43, %s46
      %p55 = scmp.eq.s32.totalorder %s26, 1
      %p56 = por %p54, %p55
      %p57 = scmp.ne.s32.totalorder %s46, %s47
      %p58 = scmp.eq.s32.totalorder %s26, 0
      %p59 = por %p57, %p58
      %p60 = scmp.ne.s32.totalorder %s46, %s47
      %p61 = scmp.eq.s32.totalorder %s27, 1
      %p62 = por %p60, %p61
      %p64 = scmp.ne.s32.totalorder %s47, %s63
      %p65 = scmp.eq.s32.totalorder %s27, 0
      %p66 = por %p64, %p65
      %s67 = ssub.s32 %s28, %s40
      %s68 = ssub.s32 %s29, %s36
      %s69 = sor.u32 %s67, %s68
      %p70 = scmp.eq.s32.totalorder %s69, 0
      %s72 = sadd.s32 %s71, 1
      %s73 = scalar_select %p70, %s71, %s72
      %p76 = pneg %p70
      %p77 = scmp.eq.s32.totalorder %s21, 1
      %p78 = por %p76, %p77
      %p79 = scmp.ne.s32.totalorder %s71, %s74
      %p80 = scmp.eq.s32.totalorder %s21, 0
      %p81 = por %p79, %p80
      %p82 = scmp.ne.s32.totalorder %s71, %s74
      %p83 = scmp.eq.s32.totalorder %s26, 1
      %p84 = por %p82, %p83
      %p85 = scmp.ne.s32.totalorder %s74, %s75
      %p86 = scmp.eq.s32.totalorder %s26, 0
      %p87 = por %p85, %p86
      %p88 = scmp.ne.s32.totalorder %s74, %s75
      %p89 = scmp.eq.s32.totalorder %s27, 1
      %p90 = por %p88, %p89
      %p92 = scmp.ne.s32.totalorder %s75, %s91
      %p93 = scmp.eq.s32.totalorder %s27, 0
      %p94 = por %p92, %p93
      %s96 = sadd.s32 %s95, 1
      %p99 = scmp.eq.s32.totalorder %s21, 1
      %p100 = scmp.ne.s32.totalorder %s95, %s97
      %p101 = scmp.eq.s32.totalorder %s21, 0
      %p102 = por %p100, %p101
      %p103 = scmp.ne.s32.totalorder %s95, %s97
      %p104 = scmp.eq.s32.totalorder %s26, 1
      %p105 = por %p103, %p104
      %p106 = scmp.ne.s32.totalorder %s97, %s98
      %p107 = scmp.eq.s32.totalorder %s26, 0
      %p108 = por %p106, %p107
      %p109 = scmp.ne.s32.totalorder %s97, %s98
      %p110 = scmp.eq.s32.totalorder %s27, 1
      %p111 = por %p109, %p110
      %p113 = scmp.ne.s32.totalorder %s98, %s112
      %p114 = scmp.eq.s32.totalorder %s27, 0
      %p115 = por %p113, %p114
      %s117 = sadd.s32 %s116, 1
      %p120 = scmp.eq.s32.totalorder %s21, 1
      %p121 = scmp.ne.s32.totalorder %s116, %s118
      %p122 = scmp.eq.s32.totalorder %s21, 0
      %p123 = por %p121, %p122
      %p124 = scmp.ne.s32.totalorder %s116, %s118
      %p125 = scmp.eq.s32.totalorder %s26, 1
      %p126 = por %p124, %p125
      %p127 = scmp.ne.s32.totalorder %s118, %s119
      %p128 = scmp.eq.s32.totalorder %s26, 0
      %p129 = por %p127, %p128
      %p130 = scmp.ne.s32.totalorder %s118, %s119
      %p131 = scmp.eq.s32.totalorder %s27, 1
      %p132 = por %p130, %p131
      %p134 = scmp.ne.s32.totalorder %s119, %s133
      %p135 = scmp.eq.s32.totalorder %s27, 0
      %p136 = por %p134, %p135
      %s138 = sadd.s32 %s137, 1
      %p141 = scmp.eq.s32.totalorder %s21, 1
      %p142 = scmp.ne.s32.totalorder %s137, %s139
      %p143 = scmp.eq.s32.totalorder %s21, 0
      %p144 = por %p142, %p143
      %p145 = scmp.ne.s32.totalorder %s137, %s139
      %p146 = scmp.eq.s32.totalorder %s26, 1
      %p147 = por %p145, %p146
      %p148 = scmp.ne.s32.totalorder %s139, %s140
      %p149 = scmp.eq.s32.totalorder %s26, 0
      %p150 = por %p148, %p149
      %p151 = scmp.ne.s32.totalorder %s139, %s140
      %p152 = scmp.eq.s32.totalorder %s27, 1
      %p153 = por %p151, %p152
      %p155 = scmp.ne.s32.totalorder %s140, %s154
      %p156 = scmp.eq.s32.totalorder %s27, 0
      %p157 = por %p155, %p156
      %s158 = ssub.s32 %s28, %s40
      %s159 = ssub.s32 %s29, %s36
      %s160 = sor.u32 %s158, %s159
      %p161 = scmp.eq.s32.totalorder %s160, 0
      %s163 = sadd.s32 %s162, 1
      %s164 = scalar_select %p161, %s162, %s163
      %p167 = pneg %p161
      %p168 = scmp.eq.s32.totalorder %s21, 1
      %p169 = por %p167, %p168
      %p170 = scmp.ne.s32.totalorder %s162, %s165
      %p171 = scmp.eq.s32.totalorder %s21, 0
      %p172 = por %p170, %p171
      %p173 = scmp.ne.s32.totalorder %s162, %s165
      %p174 = scmp.eq.s32.totalorder %s26, 1
      %p175 = por %p173, %p174
      %p176 = scmp.ne.s32.totalorder %s165, %s166
      %p177 = scmp.eq.s32.totalorder %s26, 0
      %p178 = por %p176, %p177
      %p179 = scmp.ne.s32.totalorder %s165, %s166
      %p180 = scmp.eq.s32.totalorder %s27, 1
      %p181 = por %p179, %p180
      %p183 = scmp.ne.s32.totalorder %s166, %s182
      %p184 = scmp.eq.s32.totalorder %s27, 0
      %p185 = por %p183, %p184
      %p186 = scmp.le.s32.totalorder 1, %s21
      %p187 = scmp.lt.s32.totalorder %s21, 3
      %p188 = pnand %p186, %p187
      %p189 = pneg %p188
      // Predicated region
      $region9: #{tpu_custom_call.1} parent=5 // pred_check
        _
      $region10: #{tpu_custom_call.1} parent=5 // pred_check_branch
        %191 = sbr.rel (%p188) target = $region12
      $region11: #{tpu_custom_call.1} parent=5 // pred_region
        %s192 = ssub.s32 %s21, 1
        // Predicated region
        $region13: #{tpu_custom_call.1} parent=11 // pred_check
          %p193 = pneg %p108
        $region14: #{tpu_custom_call.1} parent=11 // pred_check_branch
          %195 = sbr.rel (%p193) target = $region16
        $region15: #{tpu_custom_call.1} parent=11 // pred_region
          %s197 = ssub.s32 512, 512
          %198 = vsyncadd [#allocation8], %s197
          %s199 = sshll.u32 [#allocation9], 4
          %s200 = int_to_ptr.vmem [resolvable:$true] %s199
          %205 = dma.hbm_to_vmem [thread:$0]  %s2, 512, %s200, [#allocation8], 128, 128, 8
        $region16: #{tpu_custom_call.1} parent=11 // pred_fallthru
          _
        // Predicated region
        $region17: #{tpu_custom_call.1} parent=11 // pred_check
          %p206 = pneg %p129
        $region18: #{tpu_custom_call.1} parent=11 // pred_check_branch
          %208 = sbr.rel (%p206) target = $region20
        $region19: #{tpu_custom_call.1} parent=11 // pred_region
          %s210 = ssub.s32 512, 512
          %211 = vsyncadd [#allocation11], %s210
          %s212 = sshll.u32 [#allocation10], 4
          %s213 = int_to_ptr.vmem [resolvable:$true] %s212
          %218 = dma.hbm_to_vmem [thread:$0]  %s3, 512, %s213, [#allocation11], 128, 128, 8
        $region20: #{tpu_custom_call.1} parent=11 // pred_fallthru
          _
        // Predicated region
        $region21: #{tpu_custom_call.1} parent=11 // pred_check
          %p219 = pneg %p150
        $region22: #{tpu_custom_call.1} parent=11 // pred_check_branch
          %221 = sbr.rel (%p219) target = $region24
        $region23: #{tpu_custom_call.1} parent=11 // pred_region
          %s223 = ssub.s32 512, 512
          %224 = vsyncadd [#allocation11], %s223
          %s225 = sshll.u32 [#allocation12], 4
          %s226 = int_to_ptr.vmem [resolvable:$true] %s225
          %231 = dma.hbm_to_vmem [thread:$0]  %s4, 512, %s226, [#allocation11], 128, 128, 8
        $region24: #{tpu_custom_call.1} parent=11 // pred_fallthru
          _
      $region12: #{tpu_custom_call.1} parent=5 // pred_fallthru
        _
      %p232 = scmp.lt.s32.totalorder %s21, 2
      // Predicated region
      $region25: #{tpu_custom_call.1} parent=5 // pred_check
        %p233 = pneg %p232
      $region26: #{tpu_custom_call.1} parent=5 // pred_check_branch
        %235 = sbr.rel (%p233) target = $region28
      $region27: #{tpu_custom_call.1} parent=5 // pred_region
        // Predicated region
        $region29: #{tpu_custom_call.1} parent=27 // pred_check
          %p236 = pneg %p53
        $region30: #{tpu_custom_call.1} parent=27 // pred_check_branch
          %238 = sbr.rel (%p236) target = $region32
        $region31: #{tpu_custom_call.1} parent=27 // pred_region
          %s239 = sand.u32 %s43, 1
          %s240 = scalar_lea.sflag [#allocation5], %s239
          %s241 = sand.u32 %s43, 1
          %s242 = smul.addr %s241, 8
          %s243 = scalar_lea.vmem [#allocation4], %s242
          %s245 = ssub.s32 128, 128
          %246 = vsyncadd %s240, %s245
          %s247 = smul.addr %s28, 128
          %s248 = scalar_lea.hbm %s0, %s247
          %s250 = sshll.u32 %s243, 4
          %s251 = int_to_ptr.vmem [resolvable:$true] %s250
          %253 = dma.hbm_to_vmem [thread:$0]  %s248, 128, %s251, %s240
        $region32: #{tpu_custom_call.1} parent=27 // pred_fallthru
          _
        // Predicated region
        $region33: #{tpu_custom_call.1} parent=27 // pred_check
          %p254 = pneg %p81
        $region34: #{tpu_custom_call.1} parent=27 // pred_check_branch
          %256 = sbr.rel (%p254) target = $region36
        $region35: #{tpu_custom_call.1} parent=27 // pred_region
          %s257 = sand.u32 %s21, 1
          %s258 = scalar_lea.sflag [#allocation8], %s257
          %s259 = sand.u32 %s71, 1
          %s260 = smul.addr %s259, 8
          %s261 = scalar_lea.vmem [#allocation7], %s260
          %s263 = ssub.s32 128, 128
          %264 = vsyncadd %s258, %s263
          %s265 = sadd.s32 %s29, %s28
          %s266 = smul.addr %s265, 128
          %s267 = scalar_lea.hbm %s1, %s266
          %s269 = sshll.u32 %s261, 4
          %s270 = int_to_ptr.vmem [resolvable:$true] %s269
          %272 = dma.hbm_to_vmem [thread:$0]  %s267, 128, %s270, %s258
        $region36: #{tpu_custom_call.1} parent=27 // pred_fallthru
          _
      $region28: #{tpu_custom_call.1} parent=5 // pred_fallthru
        _
      %p273 = scmp.le.s32.totalorder 1, %s21
      %p274 = scmp.lt.s32.totalorder %s21, 3
      %p275 = pnand %p273, %p274
      %p276 = pneg %p275
      // Predicated region
      $region37: #{tpu_custom_call.1} parent=5 // pred_check
        _
      $region38: #{tpu_custom_call.1} parent=5 // pred_check_branch
        %278 = sbr.rel (%p275) target = $region40
      $region39: #{tpu_custom_call.1} parent=5 // pred_region
        %s279 = ssub.s32 %s21, 1
        %s280 = sand.u32 %s46, 1
        %s281 = scalar_lea.sflag [#allocation5], %s280
        %s282 = sand.u32 %s46, 1
        %s283 = smul.addr %s282, 8
        %s284 = scalar_lea.vmem [#allocation4], %s283
        // Predicated region
        $region41: #{tpu_custom_call.1} parent=39 // pred_check
          %p285 = pneg %p59
        $region42: #{tpu_custom_call.1} parent=39 // pred_check_branch
          %287 = sbr.rel (%p285) target = $region44
        $region43: #{tpu_custom_call.1} parent=39 // pred_region
          %288 = dma.done %s281, 128
        $region44: #{tpu_custom_call.1} parent=39 // pred_fallthru
          _
        %s289 = sand.u32 %s26, 1
        %s290 = scalar_lea.sflag [#allocation8], %s289
        %s291 = sand.u32 %s74, 1
        %s292 = smul.addr %s291, 8
        %s293 = scalar_lea.vmem [#allocation7], %s292
        // Predicated region
        $region45: #{tpu_custom_call.1} parent=39 // pred_check
          %p294 = pneg %p87
        $region46: #{tpu_custom_call.1} parent=39 // pred_check_branch
          %296 = sbr.rel (%p294) target = $region48
        $region47: #{tpu_custom_call.1} parent=39 // pred_region
          %297 = dma.done %s290, 128
        $region48: #{tpu_custom_call.1} parent=39 // pred_fallthru
          _
        // Predicated region
        $region49: #{tpu_custom_call.1} parent=39 // pred_check
          %p298 = pneg %p108
        $region50: #{tpu_custom_call.1} parent=39 // pred_check_branch
          %300 = sbr.rel (%p298) target = $region52
        $region51: #{tpu_custom_call.1} parent=39 // pred_region
          %301 = dma.done [#allocation8], 512
        $region52: #{tpu_custom_call.1} parent=39 // pred_fallthru
          _
        // Predicated region
        $region53: #{tpu_custom_call.1} parent=39 // pred_check
          %p302 = pneg %p129
        $region54: #{tpu_custom_call.1} parent=39 // pred_check_branch
          %304 = sbr.rel (%p302) target = $region56
        $region55: #{tpu_custom_call.1} parent=39 // pred_region
          %305 = dma.done [#allocation11], 512
        $region56: #{tpu_custom_call.1} parent=39 // pred_fallthru
          _
        // Predicated region
        $region57: #{tpu_custom_call.1} parent=39 // pred_check
          %p306 = pneg %p150
        $region58: #{tpu_custom_call.1} parent=39 // pred_check_branch
          %308 = sbr.rel (%p306) target = $region60
        $region59: #{tpu_custom_call.1} parent=39 // pred_region
          %309 = dma.done [#allocation11], 512
        $region60: #{tpu_custom_call.1} parent=39 // pred_fallthru
          _
        %s310 = sand.u32 %s46, 1
        %s311 = scalar_lea.sflag [#allocation5], %s310
        %s312 = sand.u32 %s46, 1
        %s313 = smul.addr %s312, 8
        %s314 = scalar_lea.vmem [#allocation4], %s313
        %p315 = pneg %p59
        %p316 = pneg %p56
        %s317 = sand.u32 %s26, 1
        %s318 = scalar_lea.sflag [#allocation8], %s317
        %s319 = sand.u32 %s74, 1
        %s320 = smul.addr %s319, 8
        %s321 = scalar_lea.vmem [#allocation7], %s320
        %p322 = pneg %p87
        %p323 = pneg %p84
        %p324 = pneg %p108
        %p325 = pneg %p105
        %p326 = pneg %p129
        %p327 = pneg %p126
        %p328 = pneg %p150
        %p329 = pneg %p147
        %p330 = pneg %p178
        %p331 = pneg %p175
        %s332 = sand.u32 %s165, 1
        %s333 = scalar_lea.sflag [#allocation6], %s332
        %s334 = sand.u32 %s165, 1
        %s335 = smul.addr %s334, 8
        %s336 = scalar_lea.vmem [#allocation13], %s335
        %p337 = scmp.eq.s32.totalorder %s31, 0
        // Predicated region
        $region61: #{tpu_custom_call.1} parent=39 // pred_check
          %p338 = pneg %p337
        $region62: #{tpu_custom_call.1} parent=39 // pred_check_branch
          %340 = sbr.rel (%p338) target = $region64
        $region63: #{tpu_custom_call.1} parent=39 // pred_region
          %v341 = vld [vmem:[%s284] sm:$0xff]
          %v342 = vld [vmem:[#allocation10] sm:$0xff]
          %v343 = vld [vmem:[#allocation10 + $0x8] sm:$0xff]
          %v344 = vld [vmem:[#allocation10 + $0x10] sm:$0xff]
          %v345 = vld [vmem:[#allocation10 + $0x18] sm:$0xff]
          %vm346 = vcmask 261120
          %v348 = vsel %vm346, %v341, 0
          %v351 = vsel %vm346, %v342, 0
          %v354 = vsel %vm346, %v343, 0
          %v357 = vsel %vm346, %v344, 0
          %v360 = vsel %vm346, %v345, 0
          %362 = vmatprep.subr.mxu0 0.0
          %363 = vmatpush1.xpose.msra.mxu0 %v351
          %364 = vmatprep.subr.mxu0 0.0
          %365 = vmatpush1.xpose.msra.mxu0 %v354
          %366 = vmatprep.subr.mxu0 0.0
          %367 = vmatpush1.xpose.msra.mxu0 %v357
          %368 = vmatprep.subr.mxu0 0.0
          %369 = vmatpush1.xpose.msra.mxu0 %v360
          %370 = vmatprep.subr.mxu0 0.0
          %371 = vmatpush1.xpose.msra.mxu0 0.0
          %372 = vmatprep.subr.mxu0 0.0
          %373 = vmatpush1.xpose.msra.mxu0 0.0
          %374 = vmatprep.subr.mxu0 0.0
          %375 = vmatpush1.xpose.msra.mxu0 0.0
          %376 = vmatprep.subr.mxu0 0.0
          %377 = vmatpush1.xpose.msra.mxu0 0.0
          %378 = vmatprep.subr.mxu0 0.0
          %379 = vmatpush1.xpose.msra.mxu0 0.0
          %380 = vmatprep.subr.mxu0 0.0
          %381 = vmatpush1.xpose.msra.mxu0 0.0
          %382 = vmatprep.subr.mxu0 0.0
          %383 = vmatpush1.xpose.msra.mxu0 0.0
          %384 = vmatprep.subr.mxu0 0.0
          %385 = vmatpush1.xpose.msra.mxu0 0.0
          %386 = vmatprep.subr.mxu0 0.0
          %387 = vmatpush1.xpose.msra.mxu0 0.0
          %388 = vmatprep.subr.mxu0 0.0
          %389 = vmatpush1.xpose.msra.mxu0 0.0
          %390 = vmatprep.subr.mxu0 0.0
          %391 = vmatpush1.xpose.msra.mxu0 0.0
          %392 = vmatprep.subr.mxu0 0.0
          %393 = vmatpush1.xpose.msra.mxu0 0.0
          %394 = vmatprep.subr.mxu0 0.0
          %395 = vmatpush1.xpose.msra.mxu0 0.0
          %396 = vmatprep.subr.mxu0 0.0
          %397 = vmatpush1.xpose.msra.mxu0 0.0
          %398 = vmatprep.subr.mxu0 0.0
          %399 = vmatpush1.xpose.msra.mxu0 0.0
          %400 = vmatprep.subr.mxu0 0.0
          %401 = vmatpush1.xpose.msra.mxu0 0.0
          %402 = vmatprep.subr.mxu0 0.0
          %403 = vmatpush1.xpose.msra.mxu0 0.0
          %404 = vmatprep.subr.mxu0 0.0
          %405 = vmatpush1.xpose.msra.mxu0 0.0
          %406 = vmatprep.subr.mxu0 0.0
          %407 = vmatpush1.xpose.msra.mxu0 0.0
          %408 = vmatprep.subr.mxu0 0.0
          %409 = vmatpush1.xpose.msra.mxu0 0.0
          %410 = vmatprep.subr.mxu0 0.0
          %411 = vmatpush1.xpose.msra.mxu0 0.0
          %412 = vmatprep.subr.mxu0 0.0
          %413 = vmatpush1.xpose.msra.mxu0 0.0
          %414 = vmatprep.subr.mxu0 0.0
          %415 = vmatpush1.xpose.msra.mxu0 0.0
          %416 = vmatprep.subr.mxu0 0.0
          %417 = vmatpush1.xpose.msra.mxu0 0.0
          %418 = vmatprep.subr.mxu0 0.0
          %419 = vmatpush1.xpose.msra.mxu0 0.0
          %420 = vmatprep.subr.mxu0 0.0
          %421 = vmatpush1.xpose.msra.mxu0 0.0
          %422 = vmatprep.subr.mxu0 0.0
          %423 = vmatpush1.xpose.msra.mxu0 0.0
          %424 = vmatprep.subr.mxu0 0.0
          %425 = vmatpush1.xpose.msra.mxu0 0.0
          %426 = vmatprep.mubr.f32.mxu0 0.0
          %427 = vmatmul.mubr.f32.gmra.mrb[0].mxu0 %v348
          %v428 = vpop.f32.mrb[0].mxu0
          %v429 = vadd.f32 0.0, %v428
          %v430 = vpop.f32.mrb[0].mxu0
          %431 = vdwg.mxu0
          %432 = vst.msk [vmem:[#allocation2] sm:$0xff] %vm346, %v429
          %v433 = vld [vmem:[#allocation12] sm:$0xff]
          %v434 = vld [vmem:[#allocation12 + $0x8] sm:$0xff]
          %v435 = vld [vmem:[#allocation12 + $0x10] sm:$0xff]
          %v436 = vld [vmem:[#allocation12 + $0x18] sm:$0xff]
          %v438 = vsel %vm346, %v433, 0
          %v441 = vsel %vm346, %v434, 0
          %v444 = vsel %vm346, %v435, 0
          %v447 = vsel %vm346, %v436, 0
          %449 = vmatprep.subr.mxu0 0.0
          %450 = vmatpush1.xpose.msra.mxu0 %v438
          %451 = vmatprep.subr.mxu0 0.0
          %452 = vmatpush1.xpose.msra.mxu0 %v441
          %453 = vmatprep.subr.mxu0 0.0
          %454 = vmatpush1.xpose.msra.mxu0 %v444
          %455 = vmatprep.subr.mxu0 0.0
          %456 = vmatpush1.xpose.msra.mxu0 %v447
          %457 = vmatprep.subr.mxu0 0.0
          %458 = vmatpush1.xpose.msra.mxu0 0.0
          %459 = vmatprep.subr.mxu0 0.0
          %460 = vmatpush1.xpose.msra.mxu0 0.0
          %461 = vmatprep.subr.mxu0 0.0
          %462 = vmatpush1.xpose.msra.mxu0 0.0
          %463 = vmatprep.subr.mxu0 0.0
          %464 = vmatpush1.xpose.msra.mxu0 0.0
          %465 = vmatprep.subr.mxu0 0.0
          %466 = vmatpush1.xpose.msra.mxu0 0.0
          %467 = vmatprep.subr.mxu0 0.0
          %468 = vmatpush1.xpose.msra.mxu0 0.0
          %469 = vmatprep.subr.mxu0 0.0
          %470 = vmatpush1.xpose.msra.mxu0 0.0
          %471 = vmatprep.subr.mxu0 0.0
          %472 = vmatpush1.xpose.msra.mxu0 0.0
          %473 = vmatprep.subr.mxu0 0.0
          %474 = vmatpush1.xpose.msra.mxu0 0.0
          %475 = vmatprep.subr.mxu0 0.0
          %476 = vmatpush1.xpose.msra.mxu0 0.0
          %477 = vmatprep.subr.mxu0 0.0
          %478 = vmatpush1.xpose.msra.mxu0 0.0
          %479 = vmatprep.subr.mxu0 0.0
          %480 = vmatpush1.xpose.msra.mxu0 0.0
          %481 = vmatprep.subr.mxu0 0.0
          %482 = vmatpush1.xpose.msra.mxu0 0.0
          %483 = vmatprep.subr.mxu0 0.0
          %484 = vmatpush1.xpose.msra.mxu0 0.0
          %485 = vmatprep.subr.mxu0 0.0
          %486 = vmatpush1.xpose.msra.mxu0 0.0
          %487 = vmatprep.subr.mxu0 0.0
          %488 = vmatpush1.xpose.msra.mxu0 0.0
          %489 = vmatprep.subr.mxu0 0.0
          %490 = vmatpush1.xpose.msra.mxu0 0.0
          %491 = vmatprep.subr.mxu0 0.0
          %492 = vmatpush1.xpose.msra.mxu0 0.0
          %493 = vmatprep.subr.mxu0 0.0
          %494 = vmatpush1.xpose.msra.mxu0 0.0
          %495 = vmatprep.subr.mxu0 0.0
          %496 = vmatpush1.xpose.msra.mxu0 0.0
          %497 = vmatprep.subr.mxu0 0.0
          %498 = vmatpush1.xpose.msra.mxu0 0.0
          %499 = vmatprep.subr.mxu0 0.0
          %500 = vmatpush1.xpose.msra.mxu0 0.0
          %501 = vmatprep.subr.mxu0 0.0
          %502 = vmatpush1.xpose.msra.mxu0 0.0
          %503 = vmatprep.subr.mxu0 0.0
          %504 = vmatpush1.xpose.msra.mxu0 0.0
          %505 = vmatprep.subr.mxu0 0.0
          %506 = vmatpush1.xpose.msra.mxu0 0.0
          %507 = vmatprep.subr.mxu0 0.0
          %508 = vmatpush1.xpose.msra.mxu0 0.0
          %509 = vmatprep.subr.mxu0 0.0
          %510 = vmatpush1.xpose.msra.mxu0 0.0
          %511 = vmatprep.subr.mxu0 0.0
          %512 = vmatpush1.xpose.msra.mxu0 0.0
          %513 = vmatprep.mubr.f32.mxu0 0.0
          %514 = vmatmul.mubr.f32.gmra.mrb[0].mxu0 %v348
          %v515 = vpop.f32.mrb[0].mxu0
          %v516 = vadd.f32 0.0, %v515
          %v517 = vpop.f32.mrb[0].mxu0
          %518 = vdwg.mxu0
          %519 = vst.msk [vmem:[#allocation3] sm:$0xff] %vm346, %v516
        $region64: #{tpu_custom_call.1} parent=39 // pred_fallthru
          _
        %v520 = vld [vmem:[%s293] sm:$0xff]
        %v521 = vld [vmem:[#allocation9] sm:$0xff]
        %v522 = vld [vmem:[#allocation9 + $0x8] sm:$0xff]
        %v523 = vld [vmem:[#allocation9 + $0x10] sm:$0xff]
        %v524 = vld [vmem:[#allocation9 + $0x18] sm:$0xff]
        %vm525 = vcmask 261120
        %v527 = vsel %vm525, %v520, 0
        %v530 = vsel %vm525, %v521, 0
        %v533 = vsel %vm525, %v522, 0
        %v536 = vsel %vm525, %v523, 0
        %v539 = vsel %vm525, %v524, 0
        %541 = vmatprep.subr.mxu0 0.0
        %542 = vmatpush1.xpose.msra.mxu0 %v530
        %543 = vmatprep.subr.mxu0 0.0
        %544 = vmatpush1.xpose.msra.mxu0 %v533
        %545 = vmatprep.subr.mxu0 0.0
        %546 = vmatpush1.xpose.msra.mxu0 %v536
        %547 = vmatprep.subr.mxu0 0.0
        %548 = vmatpush1.xpose.msra.mxu0 %v539
        %549 = vmatprep.subr.mxu0 0.0
        %550 = vmatpush1.xpose.msra.mxu0 0.0
        %551 = vmatprep.subr.mxu0 0.0
        %552 = vmatpush1.xpose.msra.mxu0 0.0
        %553 = vmatprep.subr.mxu0 0.0
        %554 = vmatpush1.xpose.msra.mxu0 0.0
        %555 = vmatprep.subr.mxu0 0.0
        %556 = vmatpush1.xpose.msra.mxu0 0.0
        %557 = vmatprep.subr.mxu0 0.0
        %558 = vmatpush1.xpose.msra.mxu0 0.0
        %559 = vmatprep.subr.mxu0 0.0
        %560 = vmatpush1.xpose.msra.mxu0 0.0
        %561 = vmatprep.subr.mxu0 0.0
        %562 = vmatpush1.xpose.msra.mxu0 0.0
        %563 = vmatprep.subr.mxu0 0.0
        %564 = vmatpush1.xpose.msra.mxu0 0.0
        %565 = vmatprep.subr.mxu0 0.0
        %566 = vmatpush1.xpose.msra.mxu0 0.0
        %567 = vmatprep.subr.mxu0 0.0
        %568 = vmatpush1.xpose.msra.mxu0 0.0
        %569 = vmatprep.subr.mxu0 0.0
        %570 = vmatpush1.xpose.msra.mxu0 0.0
        %571 = vmatprep.subr.mxu0 0.0
        %572 = vmatpush1.xpose.msra.mxu0 0.0
        %573 = vmatprep.subr.mxu0 0.0
        %574 = vmatpush1.xpose.msra.mxu0 0.0
        %575 = vmatprep.subr.mxu0 0.0
        %576 = vmatpush1.xpose.msra.mxu0 0.0
        %577 = vmatprep.subr.mxu0 0.0
        %578 = vmatpush1.xpose.msra.mxu0 0.0
        %579 = vmatprep.subr.mxu0 0.0
        %580 = vmatpush1.xpose.msra.mxu0 0.0
        %581 = vmatprep.subr.mxu0 0.0
        %582 = vmatpush1.xpose.msra.mxu0 0.0
        %583 = vmatprep.subr.mxu0 0.0
        %584 = vmatpush1.xpose.msra.mxu0 0.0
        %585 = vmatprep.subr.mxu0 0.0
        %586 = vmatpush1.xpose.msra.mxu0 0.0
        %587 = vmatprep.subr.mxu0 0.0
        %588 = vmatpush1.xpose.msra.mxu0 0.0
        %589 = vmatprep.subr.mxu0 0.0
        %590 = vmatpush1.xpose.msra.mxu0 0.0
        %591 = vmatprep.subr.mxu0 0.0
        %592 = vmatpush1.xpose.msra.mxu0 0.0
        %593 = vmatprep.subr.mxu0 0.0
        %594 = vmatpush1.xpose.msra.mxu0 0.0
        %595 = vmatprep.subr.mxu0 0.0
        %596 = vmatpush1.xpose.msra.mxu0 0.0
        %597 = vmatprep.subr.mxu0 0.0
        %598 = vmatpush1.xpose.msra.mxu0 0.0
        %599 = vmatprep.subr.mxu0 0.0
        %600 = vmatpush1.xpose.msra.mxu0 0.0
        %601 = vmatprep.subr.mxu0 0.0
        %602 = vmatpush1.xpose.msra.mxu0 0.0
        %603 = vmatprep.subr.mxu0 0.0
        %604 = vmatpush1.xpose.msra.mxu0 0.0
        %605 = vmatprep.mubr.f32.mxu0 0.0
        %606 = vmatmul.mubr.f32.gmra.mrb[0].mxu0 %v527
        %v607 = vpop.f32.mrb[0].mxu0
        %v608 = vadd.f32 0.0, %v607
        %v609 = vpop.f32.mrb[0].mxu0
        %610 = vdwg.mxu0
        %v611 = vmul.f32 %v608, 0.17677669
        %v612 = vld [vmem:[#allocation2] sm:$0xff]
        %v613 = vld [vmem:[#allocation3] sm:$0xff]
        %vm614 = vcmask 64512
        %v616 = vsel %vm614, %v611, 0
        %v619 = vsel %vm614, %v612, 0
        %621 = vmatprep.subr.mxu0 0.0
        %622 = vmatpush1.xpose.msra.mxu0 %v619
        %623 = vmatprep.subr.mxu0 0.0
        %624 = vmatpush1.xpose.msra.mxu0 0.0
        %625 = vmatprep.subr.mxu0 0.0
        %626 = vmatpush1.xpose.msra.mxu0 0.0
        %627 = vmatprep.subr.mxu0 0.0
        %628 = vmatpush1.xpose.msra.mxu0 0.0
        %629 = vmatprep.subr.mxu0 0.0
        %630 = vmatpush1.xpose.msra.mxu0 0.0
        %631 = vmatprep.subr.mxu0 0.0
        %632 = vmatpush1.xpose.msra.mxu0 0.0
        %633 = vmatprep.subr.mxu0 0.0
        %634 = vmatpush1.xpose.msra.mxu0 0.0
        %635 = vmatprep.subr.mxu0 0.0
        %636 = vmatpush1.xpose.msra.mxu0 0.0
        %637 = vmatprep.subr.mxu0 0.0
        %638 = vmatpush1.xpose.msra.mxu0 0.0
        %639 = vmatprep.subr.mxu0 0.0
        %640 = vmatpush1.xpose.msra.mxu0 0.0
        %641 = vmatprep.subr.mxu0 0.0
        %642 = vmatpush1.xpose.msra.mxu0 0.0
        %643 = vmatprep.subr.mxu0 0.0
        %644 = vmatpush1.xpose.msra.mxu0 0.0
        %645 = vmatprep.subr.mxu0 0.0
        %646 = vmatpush1.xpose.msra.mxu0 0.0
        %647 = vmatprep.subr.mxu0 0.0
        %648 = vmatpush1.xpose.msra.mxu0 0.0
        %649 = vmatprep.subr.mxu0 0.0
        %650 = vmatpush1.xpose.msra.mxu0 0.0
        %651 = vmatprep.subr.mxu0 0.0
        %652 = vmatpush1.xpose.msra.mxu0 0.0
        %653 = vmatprep.subr.mxu0 0.0
        %654 = vmatpush1.xpose.msra.mxu0 0.0
        %655 = vmatprep.subr.mxu0 0.0
        %656 = vmatpush1.xpose.msra.mxu0 0.0
        %657 = vmatprep.subr.mxu0 0.0
        %658 = vmatpush1.xpose.msra.mxu0 0.0
        %659 = vmatprep.subr.mxu0 0.0
        %660 = vmatpush1.xpose.msra.mxu0 0.0
        %661 = vmatprep.subr.mxu0 0.0
        %662 = vmatpush1.xpose.msra.mxu0 0.0
        %663 = vmatprep.subr.mxu0 0.0
        %664 = vmatpush1.xpose.msra.mxu0 0.0
        %665 = vmatprep.subr.mxu0 0.0
        %666 = vmatpush1.xpose.msra.mxu0 0.0
        %667 = vmatprep.subr.mxu0 0.0
        %668 = vmatpush1.xpose.msra.mxu0 0.0
        %669 = vmatprep.subr.mxu0 0.0
        %670 = vmatpush1.xpose.msra.mxu0 0.0
        %671 = vmatprep.subr.mxu0 0.0
        %672 = vmatpush1.xpose.msra.mxu0 0.0
        %673 = vmatprep.subr.mxu0 0.0
        %674 = vmatpush1.xpose.msra.mxu0 0.0
        %675 = vmatprep.subr.mxu0 0.0
        %676 = vmatpush1.xpose.msra.mxu0 0.0
        %677 = vmatprep.subr.mxu0 0.0
        %678 = vmatpush1.xpose.msra.mxu0 0.0
        %679 = vmatprep.subr.mxu0 0.0
        %680 = vmatpush1.xpose.msra.mxu0 0.0
        %681 = vmatprep.subr.mxu0 0.0
        %682 = vmatpush1.xpose.msra.mxu0 0.0
        %683 = vmatprep.subr.mxu0 0.0
        %684 = vmatpush1.xpose.msra.mxu0 0.0
        %685 = vmatprep.mubr.f32.mxu0 0.0
        %686 = vmatmul.mubr.f32.gmra.mrb[0].mxu0 %v616
        %v687 = vpop.f32.mrb[0].mxu0
        %v688 = vadd.f32 0.0, %v687
        %v689 = vpop.f32.mrb[0].mxu0
        %690 = vdwg.mxu0
        %v691 = vsel %vm614, %v688, -inf
        %692 = vmax.xlane.f32.xlu0 %v691
        %v693 = vpop.xlane.xlu0 %692
        %v694 = vsub.f32 %v688, %v693
        %v695 = vmul.f32 %v694, 1.442695
        %v696 = vpow.pop %v695
        %v697 = vsel %vm614, %v696, 0.0
        %698 = vadd.xlane.f32.xlu0 %v697
        %v699 = vpop.xlane.xlu0 %698
        %v700 = vrcp.pop %v699
        %v701 = vmul.f32 %v696, %v700
        %v703 = vsel %vm614, %v701, 0
        %705 = vmatprep.subr.mxu0 0.0
        %706 = vmatpush1.msra.mxu0 %v613
        %707 = vmatprep.subr.mxu0 0.0
        %708 = vmatpush1.msra.mxu0 0.0
        %709 = vmatprep.subr.mxu0 0.0
        %710 = vmatpush1.msra.mxu0 0.0
        %711 = vmatprep.subr.mxu0 0.0
        %712 = vmatpush1.msra.mxu0 0.0
        %713 = vmatprep.subr.mxu0 0.0
        %714 = vmatpush1.msra.mxu0 0.0
        %715 = vmatprep.subr.mxu0 0.0
        %716 = vmatpush1.msra.mxu0 0.0
        %717 = vmatprep.subr.mxu0 0.0
        %718 = vmatpush1.msra.mxu0 0.0
        %719 = vmatprep.subr.mxu0 0.0
        %720 = vmatpush1.msra.mxu0 0.0
        %721 = vmatprep.subr.mxu0 0.0
        %722 = vmatpush1.msra.mxu0 0.0
        %723 = vmatprep.subr.mxu0 0.0
        %724 = vmatpush1.msra.mxu0 0.0
        %725 = vmatprep.subr.mxu0 0.0
        %726 = vmatpush1.msra.mxu0 0.0
        %727 = vmatprep.subr.mxu0 0.0
        %728 = vmatpush1.msra.mxu0 0.0
        %729 = vmatprep.subr.mxu0 0.0
        %730 = vmatpush1.msra.mxu0 0.0
        %731 = vmatprep.subr.mxu0 0.0
        %732 = vmatpush1.msra.mxu0 0.0
        %733 = vmatprep.subr.mxu0 0.0
        %734 = vmatpush1.msra.mxu0 0.0
        %735 = vmatprep.subr.mxu0 0.0
        %736 = vmatpush1.msra.mxu0 0.0
        %737 = vmatprep.subr.mxu0 0.0
        %738 = vmatpush1.msra.mxu0 0.0
        %739 = vmatprep.subr.mxu0 0.0
        %740 = vmatpush1.msra.mxu0 0.0
        %741 = vmatprep.subr.mxu0 0.0
        %742 = vmatpush1.msra.mxu0 0.0
        %743 = vmatprep.subr.mxu0 0.0
        %744 = vmatpush1.msra.mxu0 0.0
        %745 = vmatprep.subr.mxu0 0.0
        %746 = vmatpush1.msra.mxu0 0.0
        %747 = vmatprep.subr.mxu0 0.0
        %748 = vmatpush1.msra.mxu0 0.0
        %749 = vmatprep.subr.mxu0 0.0
        %750 = vmatpush1.msra.mxu0 0.0
        %751 = vmatprep.subr.mxu0 0.0
        %752 = vmatpush1.msra.mxu0 0.0
        %753 = vmatprep.subr.mxu0 0.0
        %754 = vmatpush1.msra.mxu0 0.0
        %755 = vmatprep.subr.mxu0 0.0
        %756 = vmatpush1.msra.mxu0 0.0
        %757 = vmatprep.subr.mxu0 0.0
        %758 = vmatpush1.msra.mxu0 0.0
        %759 = vmatprep.subr.mxu0 0.0
        %760 = vmatpush1.msra.mxu0 0.0
        %761 = vmatprep.subr.mxu0 0.0
        %762 = vmatpush1.msra.mxu0 0.0
        %763 = vmatprep.subr.mxu0 0.0
        %764 = vmatpush1.msra.mxu0 0.0
        %765 = vmatprep.subr.mxu0 0.0
        %766 = vmatpush1.msra.mxu0 0.0
        %767 = vmatprep.subr.mxu0 0.0
        %768 = vmatpush1.msra.mxu0 0.0
        %769 = vmatprep.mubr.f32.mxu0 0.0
        %770 = vmatmul.mubr.f32.gmra.mrb[0].mxu0 %v703
        %v771 = vpop.f32.mrb[0].mxu0
        %v772 = vadd.f32 0.0, %v771
        %v773 = vpop.f32.mrb[0].mxu0
        %774 = vdwg.mxu0
        %775 = vst.msk [vmem:[%s336] sm:$0xff] %vm614, %v772
        %776 = vrot.lane.b32.xlu0 %v611, 120
        %v777 = vpop.permute.xlu0 %776
        %778 = vrot.lane.b32.xlu0 %v612, 120
        %v779 = vpop.permute.xlu0 %778
        %v780 = vsel %vm614, %v777, 0
        %v782 = vsel %vm614, %v779, 0
        %784 = vmatprep.subr.mxu0 0.0
        %785 = vmatpush1.xpose.msra.mxu0 %v782
        %786 = vmatprep.subr.mxu0 0.0
        %787 = vmatpush1.xpose.msra.mxu0 0.0
        %788 = vmatprep.subr.mxu0 0.0
        %789 = vmatpush1.xpose.msra.mxu0 0.0
        %790 = vmatprep.subr.mxu0 0.0
        %791 = vmatpush1.xpose.msra.mxu0 0.0
        %792 = vmatprep.subr.mxu0 0.0
        %793 = vmatpush1.xpose.msra.mxu0 0.0
        %794 = vmatprep.subr.mxu0 0.0
        %795 = vmatpush1.xpose.msra.mxu0 0.0
        %796 = vmatprep.subr.mxu0 0.0
        %797 = vmatpush1.xpose.msra.mxu0 0.0
        %798 = vmatprep.subr.mxu0 0.0
        %799 = vmatpush1.xpose.msra.mxu0 0.0
        %800 = vmatprep.subr.mxu0 0.0
        %801 = vmatpush1.xpose.msra.mxu0 0.0
        %802 = vmatprep.subr.mxu0 0.0
        %803 = vmatpush1.xpose.msra.mxu0 0.0
        %804 = vmatprep.subr.mxu0 0.0
        %805 = vmatpush1.xpose.msra.mxu0 0.0
        %806 = vmatprep.subr.mxu0 0.0
        %807 = vmatpush1.xpose.msra.mxu0 0.0
        %808 = vmatprep.subr.mxu0 0.0
        %809 = vmatpush1.xpose.msra.mxu0 0.0
        %810 = vmatprep.subr.mxu0 0.0
        %811 = vmatpush1.xpose.msra.mxu0 0.0
        %812 = vmatprep.subr.mxu0 0.0
        %813 = vmatpush1.xpose.msra.mxu0 0.0
        %814 = vmatprep.subr.mxu0 0.0
        %815 = vmatpush1.xpose.msra.mxu0 0.0
        %816 = vmatprep.subr.mxu0 0.0
        %817 = vmatpush1.xpose.msra.mxu0 0.0
        %818 = vmatprep.subr.mxu0 0.0
        %819 = vmatpush1.xpose.msra.mxu0 0.0
        %820 = vmatprep.subr.mxu0 0.0
        %821 = vmatpush1.xpose.msra.mxu0 0.0
        %822 = vmatprep.subr.mxu0 0.0
        %823 = vmatpush1.xpose.msra.mxu0 0.0
        %824 = vmatprep.subr.mxu0 0.0
        %825 = vmatpush1.xpose.msra.mxu0 0.0
        %826 = vmatprep.subr.mxu0 0.0
        %827 = vmatpush1.xpose.msra.mxu0 0.0
        %828 = vmatprep.subr.mxu0 0.0
        %829 = vmatpush1.xpose.msra.mxu0 0.0
        %830 = vmatprep.subr.mxu0 0.0
        %831 = vmatpush1.xpose.msra.mxu0 0.0
        %832 = vmatprep.subr.mxu0 0.0
        %833 = vmatpush1.xpose.msra.mxu0 0.0
        %834 = vmatprep.subr.mxu0 0.0
        %835 = vmatpush1.xpose.msra.mxu0 0.0
        %836 = vmatprep.subr.mxu0 0.0
        %837 = vmatpush1.xpose.msra.mxu0 0.0
        %838 = vmatprep.subr.mxu0 0.0
        %839 = vmatpush1.xpose.msra.mxu0 0.0
        %840 = vmatprep.subr.mxu0 0.0
        %841 = vmatpush1.xpose.msra.mxu0 0.0
        %842 = vmatprep.subr.mxu0 0.0
        %843 = vmatpush1.xpose.msra.mxu0 0.0
        %844 = vmatprep.subr.mxu0 0.0
        %845 = vmatpush1.xpose.msra.mxu0 0.0
        %846 = vmatprep.subr.mxu0 0.0
        %847 = vmatpush1.xpose.msra.mxu0 0.0
        %848 = vmatprep.mubr.f32.mxu0 0.0
        %849 = vmatmul.mubr.f32.gmra.mrb[0].mxu0 %v780
        %v850 = vpop.f32.mrb[0].mxu0
        %v851 = vadd.f32 0.0, %v850
        %v852 = vpop.f32.mrb[0].mxu0
        %853 = vdwg.mxu0
        %v854 = vsel %vm614, %v851, -inf
        %855 = vmax.xlane.f32.xlu0 %v854
        %v856 = vpop.xlane.xlu0 %855
        %v857 = vsub.f32 %v851, %v856
        %v858 = vmul.f32 %v857, 1.442695
        %v859 = vpow.pop %v858
        %v860 = vsel %vm614, %v859, 0.0
        %861 = vadd.xlane.f32.xlu0 %v860
        %v862 = vpop.xlane.xlu0 %861
        %v863 = vrcp.pop %v862
        %v864 = vmul.f32 %v859, %v863
        %866 = vrot.lane.b32.xlu0 %v613, 120
        %v867 = vpop.permute.xlu0 %866
        %v870 = vsel %vm614, %v864, 0
        %872 = vmatprep.subr.mxu0 0.0
        %873 = vmatpush1.msra.mxu0 %v867
        %874 = vmatprep.subr.mxu0 0.0
        %875 = vmatpush1.msra.mxu0 0.0
        %876 = vmatprep.subr.mxu0 0.0
        %877 = vmatpush1.msra.mxu0 0.0
        %878 = vmatprep.subr.mxu0 0.0
        %879 = vmatpush1.msra.mxu0 0.0
        %880 = vmatprep.subr.mxu0 0.0
        %881 = vmatpush1.msra.mxu0 0.0
        %882 = vmatprep.subr.mxu0 0.0
        %883 = vmatpush1.msra.mxu0 0.0
        %884 = vmatprep.subr.mxu0 0.0
        %885 = vmatpush1.msra.mxu0 0.0
        %886 = vmatprep.subr.mxu0 0.0
        %887 = vmatpush1.msra.mxu0 0.0
        %888 = vmatprep.subr.mxu0 0.0
        %889 = vmatpush1.msra.mxu0 0.0
        %890 = vmatprep.subr.mxu0 0.0
        %891 = vmatpush1.msra.mxu0 0.0
        %892 = vmatprep.subr.mxu0 0.0
        %893 = vmatpush1.msra.mxu0 0.0
        %894 = vmatprep.subr.mxu0 0.0
        %895 = vmatpush1.msra.mxu0 0.0
        %896 = vmatprep.subr.mxu0 0.0
        %897 = vmatpush1.msra.mxu0 0.0
        %898 = vmatprep.subr.mxu0 0.0
        %899 = vmatpush1.msra.mxu0 0.0
        %900 = vmatprep.subr.mxu0 0.0
        %901 = vmatpush1.msra.mxu0 0.0
        %902 = vmatprep.subr.mxu0 0.0
        %903 = vmatpush1.msra.mxu0 0.0
        %904 = vmatprep.subr.mxu0 0.0
        %905 = vmatpush1.msra.mxu0 0.0
        %906 = vmatprep.subr.mxu0 0.0
        %907 = vmatpush1.msra.mxu0 0.0
        %908 = vmatprep.subr.mxu0 0.0
        %909 = vmatpush1.msra.mxu0 0.0
        %910 = vmatprep.subr.mxu0 0.0
        %911 = vmatpush1.msra.mxu0 0.0
        %912 = vmatprep.subr.mxu0 0.0
        %913 = vmatpush1.msra.mxu0 0.0
        %914 = vmatprep.subr.mxu0 0.0
        %915 = vmatpush1.msra.mxu0 0.0
        %916 = vmatprep.subr.mxu0 0.0
        %917 = vmatpush1.msra.mxu0 0.0
        %918 = vmatprep.subr.mxu0 0.0
        %919 = vmatpush1.msra.mxu0 0.0
        %920 = vmatprep.subr.mxu0 0.0
        %921 = vmatpush1.msra.mxu0 0.0
        %922 = vmatprep.subr.mxu0 0.0
        %923 = vmatpush1.msra.mxu0 0.0
        %924 = vmatprep.subr.mxu0 0.0
        %925 = vmatpush1.msra.mxu0 0.0
        %926 = vmatprep.subr.mxu0 0.0
        %927 = vmatpush1.msra.mxu0 0.0
        %928 = vmatprep.subr.mxu0 0.0
        %929 = vmatpush1.msra.mxu0 0.0
        %930 = vmatprep.subr.mxu0 0.0
        %931 = vmatpush1.msra.mxu0 0.0
        %932 = vmatprep.subr.mxu0 0.0
        %933 = vmatpush1.msra.mxu0 0.0
        %934 = vmatprep.subr.mxu0 0.0
        %935 = vmatpush1.msra.mxu0 0.0
        %936 = vmatprep.mubr.f32.mxu0 0.0
        %937 = vmatmul.mubr.f32.gmra.mrb[0].mxu0 %v870
        %v938 = vpop.f32.mrb[0].mxu0
        %v939 = vadd.f32 0.0, %v938
        %v940 = vpop.f32.mrb[0].mxu0
        %941 = vdwg.mxu0
        %943 = vrot.lane.b32.xlu0 %v939, 8
        %v944 = vpop.permute.xlu0 %943
        %vm946 = vcmask 130112
        %947 = vst.msk [vmem:[%s336] sm:$0xff] %vm946, %v944
        %948 = vrot.lane.b32.xlu0 %v611, 112
        %v949 = vpop.permute.xlu0 %948
        %950 = vrot.lane.b32.xlu0 %v612, 112
        %v951 = vpop.permute.xlu0 %950
        %v952 = vsel %vm614, %v949, 0
        %v954 = vsel %vm614, %v951, 0
        %956 = vmatprep.subr.mxu0 0.0
        %957 = vmatpush1.xpose.msra.mxu0 %v954
        %958 = vmatprep.subr.mxu0 0.0
        %959 = vmatpush1.xpose.msra.mxu0 0.0
        %960 = vmatprep.subr.mxu0 0.0
        %961 = vmatpush1.xpose.msra.mxu0 0.0
        %962 = vmatprep.subr.mxu0 0.0
        %963 = vmatpush1.xpose.msra.mxu0 0.0
        %964 = vmatprep.subr.mxu0 0.0
        %965 = vmatpush1.xpose.msra.mxu0 0.0
        %966 = vmatprep.subr.mxu0 0.0
        %967 = vmatpush1.xpose.msra.mxu0 0.0
        %968 = vmatprep.subr.mxu0 0.0
        %969 = vmatpush1.xpose.msra.mxu0 0.0
        %970 = vmatprep.subr.mxu0 0.0
        %971 = vmatpush1.xpose.msra.mxu0 0.0
        %972 = vmatprep.subr.mxu0 0.0
        %973 = vmatpush1.xpose.msra.mxu0 0.0
        %974 = vmatprep.subr.mxu0 0.0
        %975 = vmatpush1.xpose.msra.mxu0 0.0
        %976 = vmatprep.subr.mxu0 0.0
        %977 = vmatpush1.xpose.msra.mxu0 0.0
        %978 = vmatprep.subr.mxu0 0.0
        %979 = vmatpush1.xpose.msra.mxu0 0.0
        %980 = vmatprep.subr.mxu0 0.0
        %981 = vmatpush1.xpose.msra.mxu0 0.0
        %982 = vmatprep.subr.mxu0 0.0
        %983 = vmatpush1.xpose.msra.mxu0 0.0
        %984 = vmatprep.subr.mxu0 0.0
        %985 = vmatpush1.xpose.msra.mxu0 0.0
        %986 = vmatprep.subr.mxu0 0.0
        %987 = vmatpush1.xpose.msra.mxu0 0.0
        %988 = vmatprep.subr.mxu0 0.0
        %989 = vmatpush1.xpose.msra.mxu0 0.0
        %990 = vmatprep.subr.mxu0 0.0
        %991 = vmatpush1.xpose.msra.mxu0 0.0
        %992 = vmatprep.subr.mxu0 0.0
        %993 = vmatpush1.xpose.msra.mxu0 0.0
        %994 = vmatprep.subr.mxu0 0.0
        %995 = vmatpush1.xpose.msra.mxu0 0.0
        %996 = vmatprep.subr.mxu0 0.0
        %997 = vmatpush1.xpose.msra.mxu0 0.0
        %998 = vmatprep.subr.mxu0 0.0
        %999 = vmatpush1.xpose.msra.mxu0 0.0
        %1000 = vmatprep.subr.mxu0 0.0
        %1001 = vmatpush1.xpose.msra.mxu0 0.0
        %1002 = vmatprep.subr.mxu0 0.0
        %1003 = vmatpush1.xpose.msra.mxu0 0.0
        %1004 = vmatprep.subr.mxu0 0.0
        %1005 = vmatpush1.xpose.msra.mxu0 0.0
        %1006 = vmatprep.subr.mxu0 0.0
        %1007 = vmatpush1.xpose.msra.mxu0 0.0
        %1008 = vmatprep.subr.mxu0 0.0
        %1009 = vmatpush1.xpose.msra.mxu0 0.0
        %1010 = vmatprep.subr.mxu0 0.0
        %1011 = vmatpush1.xpose.msra.mxu0 0.0
        %1012 = vmatprep.subr.mxu0 0.0
        %1013 = vmatpush1.xpose.msra.mxu0 0.0
        %1014 = vmatprep.subr.mxu0 0.0
        %1015 = vmatpush1.xpose.msra.mxu0 0.0
        %1016 = vmatprep.subr.mxu0 0.0
        %1017 = vmatpush1.xpose.msra.mxu0 0.0
        %1018 = vmatprep.subr.mxu0 0.0
        %1019 = vmatpush1.xpose.msra.mxu0 0.0
        %1020 = vmatprep.mubr.f32.mxu0 0.0
        %1021 = vmatmul.mubr.f32.gmra.mrb[0].mxu0 %v952
        %v1022 = vpop.f32.mrb[0].mxu0
        %v1023 = vadd.f32 0.0, %v1022
        %v1024 = vpop.f32.mrb[0].mxu0
        %1025 = vdwg.mxu0
        %v1026 = vsel %vm614, %v1023, -inf
        %1027 = vmax.xlane.f32.xlu0 %v1026
        %v1028 = vpop.xlane.xlu0 %1027
        %v1029 = vsub.f32 %v1023, %v1028
        %v1030 = vmul.f32 %v1029, 1.442695
        %v1031 = vpow.pop %v1030
        %v1032 = vsel %vm614, %v1031, 0.0
        %1033 = vadd.xlane.f32.xlu0 %v1032
        %v1034 = vpop.xlane.xlu0 %1033
        %v1035 = vrcp.pop %v1034
        %v1036 = vmul.f32 %v1031, %v1035
        %1037 = vrot.lane.b32.xlu0 %v613, 112
        %v1038 = vpop.permute.xlu0 %1037
        %v1041 = vsel %vm614, %v1036, 0
        %1043 = vmatprep.subr.mxu0 0.0
        %1044 = vmatpush1.msra.mxu0 %v1038
        %1045 = vmatprep.subr.mxu0 0.0
        %1046 = vmatpush1.msra.mxu0 0.0
        %1047 = vmatprep.subr.mxu0 0.0
        %1048 = vmatpush1.msra.mxu0 0.0
        %1049 = vmatprep.subr.mxu0 0.0
        %1050 = vmatpush1.msra.mxu0 0.0
        %1051 = vmatprep.subr.mxu0 0.0
        %1052 = vmatpush1.msra.mxu0 0.0
        %1053 = vmatprep.subr.mxu0 0.0
        %1054 = vmatpush1.msra.mxu0 0.0
        %1055 = vmatprep.subr.mxu0 0.0
        %1056 = vmatpush1.msra.mxu0 0.0
        %1057 = vmatprep.subr.mxu0 0.0
        %1058 = vmatpush1.msra.mxu0 0.0
        %1059 = vmatprep.subr.mxu0 0.0
        %1060 = vmatpush1.msra.mxu0 0.0
        %1061 = vmatprep.subr.mxu0 0.0
        %1062 = vmatpush1.msra.mxu0 0.0
        %1063 = vmatprep.subr.mxu0 0.0
        %1064 = vmatpush1.msra.mxu0 0.0
        %1065 = vmatprep.subr.mxu0 0.0
        %1066 = vmatpush1.msra.mxu0 0.0
        %1067 = vmatprep.subr.mxu0 0.0
        %1068 = vmatpush1.msra.mxu0 0.0
        %1069 = vmatprep.subr.mxu0 0.0
        %1070 = vmatpush1.msra.mxu0 0.0
        %1071 = vmatprep.subr.mxu0 0.0
        %1072 = vmatpush1.msra.mxu0 0.0
        %1073 = vmatprep.subr.mxu0 0.0
        %1074 = vmatpush1.msra.mxu0 0.0
        %1075 = vmatprep.subr.mxu0 0.0
        %1076 = vmatpush1.msra.mxu0 0.0
        %1077 = vmatprep.subr.mxu0 0.0
        %1078 = vmatpush1.msra.mxu0 0.0
        %1079 = vmatprep.subr.mxu0 0.0
        %1080 = vmatpush1.msra.mxu0 0.0
        %1081 = vmatprep.subr.mxu0 0.0
        %1082 = vmatpush1.msra.mxu0 0.0
        %1083 = vmatprep.subr.mxu0 0.0
        %1084 = vmatpush1.msra.mxu0 0.0
        %1085 = vmatprep.subr.mxu0 0.0
        %1086 = vmatpush1.msra.mxu0 0.0
        %1087 = vmatprep.subr.mxu0 0.0
        %1088 = vmatpush1.msra.mxu0 0.0
        %1089 = vmatprep.subr.mxu0 0.0
        %1090 = vmatpush1.msra.mxu0 0.0
        %1091 = vmatprep.subr.mxu0 0.0
        %1092 = vmatpush1.msra.mxu0 0.0
        %1093 = vmatprep.subr.mxu0 0.0
        %1094 = vmatpush1.msra.mxu0 0.0
        %1095 = vmatprep.subr.mxu0 0.0
        %1096 = vmatpush1.msra.mxu0 0.0
        %1097 = vmatprep.subr.mxu0 0.0
        %1098 = vmatpush1.msra.mxu0 0.0
        %1099 = vmatprep.subr.mxu0 0.0
        %1100 = vmatpush1.msra.mxu0 0.0
        %1101 = vmatprep.subr.mxu0 0.0
        %1102 = vmatpush1.msra.mxu0 0.0
        %1103 = vmatprep.subr.mxu0 0.0
        %1104 = vmatpush1.msra.mxu0 0.0
        %1105 = vmatprep.subr.mxu0 0.0
        %1106 = vmatpush1.msra.mxu0 0.0
        %1107 = vmatprep.mubr.f32.mxu0 0.0
        %1108 = vmatmul.mubr.f32.gmra.mrb[0].mxu0 %v1041
        %v1109 = vpop.f32.mrb[0].mxu0
        %v1110 = vadd.f32 0.0, %v1109
        %v1111 = vpop.f32.mrb[0].mxu0
        %1112 = vdwg.mxu0
        %1114 = vrot.lane.b32.xlu0 %v1110, 16
        %v1115 = vpop.permute.xlu0 %1114
        %vm1117 = vcmask 195712
        %1118 = vst.msk [vmem:[%s336] sm:$0xff] %vm1117, %v1115
        %1119 = vrot.lane.b32.xlu0 %v611, 104
        %v1120 = vpop.permute.xlu0 %1119
        %1121 = vrot.lane.b32.xlu0 %v612, 104
        %v1122 = vpop.permute.xlu0 %1121
        %v1123 = vsel %vm614, %v1120, 0
        %v1125 = vsel %vm614, %v1122, 0
        %1127 = vmatprep.subr.mxu0 0.0
        %1128 = vmatpush1.xpose.msra.mxu0 %v1125
        %1129 = vmatprep.subr.mxu0 0.0
        %1130 = vmatpush1.xpose.msra.mxu0 0.0
        %1131 = vmatprep.subr.mxu0 0.0
        %1132 = vmatpush1.xpose.msra.mxu0 0.0
        %1133 = vmatprep.subr.mxu0 0.0
        %1134 = vmatpush1.xpose.msra.mxu0 0.0
        %1135 = vmatprep.subr.mxu0 0.0
        %1136 = vmatpush1.xpose.msra.mxu0 0.0
        %1137 = vmatprep.subr.mxu0 0.0
        %1138 = vmatpush1.xpose.msra.mxu0 0.0
        %1139 = vmatprep.subr.mxu0 0.0
        %1140 = vmatpush1.xpose.msra.mxu0 0.0
        %1141 = vmatprep.subr.mxu0 0.0
        %1142 = vmatpush1.xpose.msra.mxu0 0.0
        %1143 = vmatprep.subr.mxu0 0.0
        %1144 = vmatpush1.xpose.msra.mxu0 0.0
        %1145 = vmatprep.subr.mxu0 0.0
        %1146 = vmatpush1.xpose.msra.mxu0 0.0
        %1147 = vmatprep.subr.mxu0 0.0
        %1148 = vmatpush1.xpose.msra.mxu0 0.0
        %1149 = vmatprep.subr.mxu0 0.0
        %1150 = vmatpush1.xpose.msra.mxu0 0.0
        %1151 = vmatprep.subr.mxu0 0.0
        %1152 = vmatpush1.xpose.msra.mxu0 0.0
        %1153 = vmatprep.subr.mxu0 0.0
        %1154 = vmatpush1.xpose.msra.mxu0 0.0
        %1155 = vmatprep.subr.mxu0 0.0
        %1156 = vmatpush1.xpose.msra.mxu0 0.0
        %1157 = vmatprep.subr.mxu0 0.0
        %1158 = vmatpush1.xpose.msra.mxu0 0.0
        %1159 = vmatprep.subr.mxu0 0.0
        %1160 = vmatpush1.xpose.msra.mxu0 0.0
        %1161 = vmatprep.subr.mxu0 0.0
        %1162 = vmatpush1.xpose.msra.mxu0 0.0
        %1163 = vmatprep.subr.mxu0 0.0
        %1164 = vmatpush1.xpose.msra.mxu0 0.0
        %1165 = vmatprep.subr.mxu0 0.0
        %1166 = vmatpush1.xpose.msra.mxu0 0.0
        %1167 = vmatprep.subr.mxu0 0.0
        %1168 = vmatpush1.xpose.msra.mxu0 0.0
        %1169 = vmatprep.subr.mxu0 0.0
        %1170 = vmatpush1.xpose.msra.mxu0 0.0
        %1171 = vmatprep.subr.mxu0 0.0
        %1172 = vmatpush1.xpose.msra.mxu0 0.0
        %1173 = vmatprep.subr.mxu0 0.0
        %1174 = vmatpush1.xpose.msra.mxu0 0.0
        %1175 = vmatprep.subr.mxu0 0.0
        %1176 = vmatpush1.xpose.msra.mxu0 0.0
        %1177 = vmatprep.subr.mxu0 0.0
        %1178 = vmatpush1.xpose.msra.mxu0 0.0
        %1179 = vmatprep.subr.mxu0 0.0
        %1180 = vmatpush1.xpose.msra.mxu0 0.0
        %1181 = vmatprep.subr.mxu0 0.0
        %1182 = vmatpush1.xpose.msra.mxu0 0.0
        %1183 = vmatprep.subr.mxu0 0.0
        %1184 = vmatpush1.xpose.msra.mxu0 0.0
        %1185 = vmatprep.subr.mxu0 0.0
        %1186 = vmatpush1.xpose.msra.mxu0 0.0
        %1187 = vmatprep.subr.mxu0 0.0
        %1188 = vmatpush1.xpose.msra.mxu0 0.0
        %1189 = vmatprep.subr.mxu0 0.0
        %1190 = vmatpush1.xpose.msra.mxu0 0.0
        %1191 = vmatprep.mubr.f32.mxu0 0.0
        %1192 = vmatmul.mubr.f32.gmra.mrb[0].mxu0 %v1123
        %v1193 = vpop.f32.mrb[0].mxu0
        %v1194 = vadd.f32 0.0, %v1193
        %v1195 = vpop.f32.mrb[0].mxu0
        %1196 = vdwg.mxu0
        %v1197 = vsel %vm614, %v1194, -inf
        %1198 = vmax.xlane.f32.xlu0 %v1197
        %v1199 = vpop.xlane.xlu0 %1198
        %v1200 = vsub.f32 %v1194, %v1199
        %v1201 = vmul.f32 %v1200, 1.442695
        %v1202 = vpow.pop %v1201
        %v1203 = vsel %vm614, %v1202, 0.0
        %1204 = vadd.xlane.f32.xlu0 %v1203
        %v1205 = vpop.xlane.xlu0 %1204
        %v1206 = vrcp.pop %v1205
        %v1207 = vmul.f32 %v1202, %v1206
        %1208 = vrot.lane.b32.xlu0 %v613, 104
        %v1209 = vpop.permute.xlu0 %1208
        %v1212 = vsel %vm614, %v1207, 0
        %1214 = vmatprep.subr.mxu0 0.0
        %1215 = vmatpush1.msra.mxu0 %v1209
        %1216 = vmatprep.subr.mxu0 0.0
        %1217 = vmatpush1.msra.mxu0 0.0
        %1218 = vmatprep.subr.mxu0 0.0
        %1219 = vmatpush1.msra.mxu0 0.0
        %1220 = vmatprep.subr.mxu0 0.0
        %1221 = vmatpush1.msra.mxu0 0.0
        %1222 = vmatprep.subr.mxu0 0.0
        %1223 = vmatpush1.msra.mxu0 0.0
        %1224 = vmatprep.subr.mxu0 0.0
        %1225 = vmatpush1.msra.mxu0 0.0
        %1226 = vmatprep.subr.mxu0 0.0
        %1227 = vmatpush1.msra.mxu0 0.0
        %1228 = vmatprep.subr.mxu0 0.0
        %1229 = vmatpush1.msra.mxu0 0.0
        %1230 = vmatprep.subr.mxu0 0.0
        %1231 = vmatpush1.msra.mxu0 0.0
        %1232 = vmatprep.subr.mxu0 0.0
        %1233 = vmatpush1.msra.mxu0 0.0
        %1234 = vmatprep.subr.mxu0 0.0
        %1235 = vmatpush1.msra.mxu0 0.0
        %1236 = vmatprep.subr.mxu0 0.0
        %1237 = vmatpush1.msra.mxu0 0.0
        %1238 = vmatprep.subr.mxu0 0.0
        %1239 = vmatpush1.msra.mxu0 0.0
        %1240 = vmatprep.subr.mxu0 0.0
        %1241 = vmatpush1.msra.mxu0 0.0
        %1242 = vmatprep.subr.mxu0 0.0
        %1243 = vmatpush1.msra.mxu0 0.0
        %1244 = vmatprep.subr.mxu0 0.0
        %1245 = vmatpush1.msra.mxu0 0.0
        %1246 = vmatprep.subr.mxu0 0.0
        %1247 = vmatpush1.msra.mxu0 0.0
        %1248 = vmatprep.subr.mxu0 0.0
        %1249 = vmatpush1.msra.mxu0 0.0
        %1250 = vmatprep.subr.mxu0 0.0
        %1251 = vmatpush1.msra.mxu0 0.0
        %1252 = vmatprep.subr.mxu0 0.0
        %1253 = vmatpush1.msra.mxu0 0.0
        %1254 = vmatprep.subr.mxu0 0.0
        %1255 = vmatpush1.msra.mxu0 0.0
        %1256 = vmatprep.subr.mxu0 0.0
        %1257 = vmatpush1.msra.mxu0 0.0
        %1258 = vmatprep.subr.mxu0 0.0
        %1259 = vmatpush1.msra.mxu0 0.0
        %1260 = vmatprep.subr.mxu0 0.0
        %1261 = vmatpush1.msra.mxu0 0.0
        %1262 = vmatprep.subr.mxu0 0.0
        %1263 = vmatpush1.msra.mxu0 0.0
        %1264 = vmatprep.subr.mxu0 0.0
        %1265 = vmatpush1.msra.mxu0 0.0
        %1266 = vmatprep.subr.mxu0 0.0
        %1267 = vmatpush1.msra.mxu0 0.0
        %1268 = vmatprep.subr.mxu0 0.0
        %1269 = vmatpush1.msra.mxu0 0.0
        %1270 = vmatprep.subr.mxu0 0.0
        %1271 = vmatpush1.msra.mxu0 0.0
        %1272 = vmatprep.subr.mxu0 0.0
        %1273 = vmatpush1.msra.mxu0 0.0
        %1274 = vmatprep.subr.mxu0 0.0
        %1275 = vmatpush1.msra.mxu0 0.0
        %1276 = vmatprep.subr.mxu0 0.0
        %1277 = vmatpush1.msra.mxu0 0.0
        %1278 = vmatprep.mubr.f32.mxu0 0.0
        %1279 = vmatmul.mubr.f32.gmra.mrb[0].mxu0 %v1212
        %v1280 = vpop.f32.mrb[0].mxu0
        %v1281 = vadd.f32 0.0, %v1280
        %v1282 = vpop.f32.mrb[0].mxu0
        %1283 = vdwg.mxu0
        %1285 = vrot.lane.b32.xlu0 %v1281, 24
        %v1286 = vpop.permute.xlu0 %1285
        %vm1288 = vcmask 261312
        %1289 = vst.msk [vmem:[%s336] sm:$0xff] %vm1288, %v1286
        %s1290 = sand.u32 %s165, 1
        %s1291 = scalar_lea.sflag [#allocation6], %s1290
        %s1292 = sand.u32 %s165, 1
        %s1293 = smul.addr %s1292, 8
        %s1294 = scalar_lea.vmem [#allocation13], %s1293
        // Predicated region
        $region65: #{tpu_custom_call.1} parent=39 // pred_check
          %p1295 = pneg %p175
        $region66: #{tpu_custom_call.1} parent=39 // pred_check_branch
          %1297 = sbr.rel (%p1295) target = $region68
        $region67: #{tpu_custom_call.1} parent=39 // pred_region
          %s1299 = ssub.s32 128, 128
          %1300 = vsyncadd %s1291, %s1299
          %s1301 = sadd.s32 %s31, %s30
          %s1302 = smul.addr %s1301, 128
          %s1303 = scalar_lea.hbm %s5, %s1302
          %s1305 = sshll.u32 %s1294, 4
          %s1306 = int_to_ptr.vmem [resolvable:$true] %s1305
          %1308 = dma.vmem_to_hbm [thread:$0]  %s1306, 128, %s1303, %s1291
        $region68: #{tpu_custom_call.1} parent=39 // pred_fallthru
          _
      $region40: #{tpu_custom_call.1} parent=5 // pred_fallthru
        _
      %p1309 = scmp.le.s32.totalorder 2, %s21
      // Predicated region
      $region69: #{tpu_custom_call.1} parent=5 // pred_check
        %p1310 = pneg %p1309
      $region70: #{tpu_custom_call.1} parent=5 // pred_check_branch
        %1312 = sbr.rel (%p1310) target = $region72
      $region71: #{tpu_custom_call.1} parent=5 // pred_region
        %s1313 = ssub.s32 %s21, 2
        // Predicated region
        $region73: #{tpu_custom_call.1} parent=71 // pred_check
          %p1314 = pneg %p181
        $region74: #{tpu_custom_call.1} parent=71 // pred_check_branch
          %1316 = sbr.rel (%p1314) target = $region76
        $region75: #{tpu_custom_call.1} parent=71 // pred_region
          %s1317 = sand.u32 %s166, 1
          %s1318 = scalar_lea.sflag [#allocation6], %s1317
          %s1319 = sand.u32 %s166, 1
          %s1320 = smul.addr %s1319, 8
          %s1321 = scalar_lea.vmem [#allocation13], %s1320
          %1322 = dma.done %s1318, 128
        $region76: #{tpu_custom_call.1} parent=71 // pred_fallthru
          _
      $region72: #{tpu_custom_call.1} parent=5 // pred_fallthru
        _
    $region6: #{tpu_custom_call.1} parent=1 // loop_footer
      %s25 = sadd.s32 1, %s21
    $region7: #{tpu_custom_call.1} parent=1 // loop_footer_branch
      %20 = sbr.rel target = $region3
    $region8: #{tpu_custom_call.1} parent=1 // loop_exit
      _
    %1323 = vsyncpa [#allocation5], 1
    %s1324 = scalar_lea.sflag [#allocation5], 1
    %1325 = vsyncpa %s1324, 1
    %1326 = vsyncpa [#allocation8], 1
    %s1327 = scalar_lea.sflag [#allocation8], 1
    %1328 = vsyncpa %s1327, 1
    %1329 = vsyncpa [#allocation11], 1
    %1330 = vsyncpa [#allocation6], 1
    %s1331 = scalar_lea.sflag [#allocation6], 1
    %1332 = vsyncpa %s1331, 1

</llo_original>
